<compile_context>
chip_gen: v6e
topology: v6e:2x2x1
jax: 0.10.0
libtpu: 0.0.40
codegen_flags: <defaults>
</compile_context>

<pallas_src>
import functools

import jax
import jax.numpy as jnp
from jax.experimental import pallas as pl
from jax.experimental.pallas import tpu as pltpu

ABIT = 4          # activation bits (ClippedReLU num_bits)
BN_EPS = 1e-5
LANE = 128


def _round_up(x, m):
    return (x + m - 1) // m * m


# ----------------------------- Pallas kernels ------------------------------ #

def _conv_bn_act_kernel(s_ref, p_ref, w_ref, b_ref, o_ref):
    # (block_m, Kp) @ (Kp, Cp) on the MXU, then fused (folded) BN bias add and
    # clipped-ReLU uniform quantization.  s_ref (SMEM) = [alpha, qs, 1/qs].
    acc = jnp.dot(p_ref[...], w_ref[...], preferred_element_type=jnp.float32)
    y = acc + b_ref[...]
    y = jnp.clip(y, 0.0, s_ref[0])
    o_ref[...] = jnp.round(y * s_ref[1]) * s_ref[2]


def _conv_bn_res_act_kernel(s_ref, p_ref, w_ref, b_ref, r_ref, o_ref):
    # Same as above but adds the residual before the final clipped-ReLU quant.
    acc = jnp.dot(p_ref[...], w_ref[...], preferred_element_type=jnp.float32)
    y = acc + b_ref[...] + r_ref[...]
    y = jnp.clip(y, 0.0, s_ref[0])
    o_ref[...] = jnp.round(y * s_ref[1]) * s_ref[2]


def fused_conv_bn_act(patches, w_scaled, bias, alpha, residual=None, *,
                      block_m=512):
    """Fused conv-as-matmul + BN bias + (residual) + ClippedReLU quant.

    patches:  (M, K) f32   im2col rows
    w_scaled: (K, Cout) f32 weight with BN scale already folded in
    bias:     (Cout,) f32   folded BN bias
    alpha:    scalar / (1,) ClippedReLU alpha
    residual: optional (M, Cout) f32
    """
    M, K = patches.shape
    Cout = w_scaled.shape[1]

    # Lane-dense padding (multiples of 128) and M padded to the tile size.
    Kp = _round_up(K, LANE)
    Cp = _round_up(Cout, LANE)
    block_m = max(8, min(block_m, _round_up(M, 8)))
    Mp = _round_up(M, block_m)

    p = jnp.pad(patches.astype(jnp.bfloat16), ((0, Mp - M), (0, Kp - K)))
    w = jnp.pad(w_scaled.astype(jnp.bfloat16), ((0, Kp - K), (0, Cp - Cout)))
    b = jnp.pad(bias.reshape(1, -1).astype(jnp.float32),
                ((0, 0), (0, Cp - Cout)))

    # Quantization scalars (computed once, outside the kernel).
    alpha_s = jnp.asarray(alpha, jnp.float32).reshape(())
    qs = (2.0 ** ABIT - 1.0) / alpha_s
    scalars = jnp.stack([alpha_s, qs, 1.0 / qs])

    grid = (Mp // block_m,)
    smem_spec = pl.BlockSpec(memory_space=pltpu.MemorySpace.SMEM)
    in_specs = [
        smem_spec,                                        # quant scalars
        pl.BlockSpec((block_m, Kp), lambda i: (i, 0)),    # patch tile (pipelined)
        pl.BlockSpec((Kp, Cp), lambda i: (0, 0)),         # weight (VMEM-resident)
        pl.BlockSpec((1, Cp), lambda i: (0, 0)),          # bias   (VMEM-resident)
    ]
    args = [scalars, p, w, b]
    kernel = _conv_bn_act_kernel
    bytes_accessed = p.size * 2 + w.size * 2 + b.size * 4 + Mp * Cp * 4

    if residual is not None:
        r = jnp.pad(residual.astype(jnp.float32),
                    ((0, Mp - M), (0, Cp - residual.shape[1])))
        in_specs.append(pl.BlockSpec((block_m, Cp), lambda i: (i, 0)))
        args.append(r)
        kernel = _conv_bn_res_act_kernel
        bytes_accessed += r.size * 4

    out = pl.pallas_call(
        kernel,
        grid=grid,
        in_specs=in_specs,
        out_specs=pl.BlockSpec((block_m, Cp), lambda i: (i, 0)),
        out_shape=jax.ShapeDtypeStruct((Mp, Cp), jnp.float32),
        compiler_params=pltpu.CompilerParams(
            dimension_semantics=("parallel",)),
        cost_estimate=pl.CostEstimate(
            flops=2 * Mp * Kp * Cp,
            transcendentals=0,
            bytes_accessed=int(bytes_accessed)),
    )(*args)
    return out[:M, :Cout]


# ------------------------------- JAX glue ---------------------------------- #

def im2col_3x3(x_nhwc, stride):
    """3x3, pad=1 im2col. Returns (N*Ho*Wo, 9*C) with patch order (ky, kx, c)."""
    N, H, W, C = x_nhwc.shape
    xp = jnp.pad(x_nhwc, ((0, 0), (1, 1), (1, 1), (0, 0)))
    Ho = (H + 2 - 3) // stride + 1
    Wo = (W + 2 - 3) // stride + 1
    cols = []
    for ky in range(3):
        for kx in range(3):
            cols.append(xp[:,
                           ky:ky + stride * (Ho - 1) + 1:stride,
                           kx:kx + stride * (Wo - 1) + 1:stride,
                           :])
    patches = jnp.concatenate(cols, axis=-1)           # (N, Ho, Wo, 9*C)
    return patches.reshape(N * Ho * Wo, 9 * C), (N, Ho, Wo)


def torch_weight_to_matmul(w_oihw):
    """PyTorch (Cout, Cin, 3, 3) -> (9*Cin, Cout) matching (ky, kx, c) patches."""
    return jnp.transpose(w_oihw, (2, 3, 1, 0)).reshape(-1, w_oihw.shape[0])


def fold_bn_into_weight(w_mat, gamma, beta, mean, var):
    """Fold BN scale into the weight matrix; return (scaled_w, bias)."""
    scale = gamma / jnp.sqrt(var + BN_EPS)
    bias = beta - mean * scale
    return w_mat * scale[None, :], bias


@functools.partial(jax.jit, static_argnames=("stride", "block_m"))
def resnet_basicblock_forward(x_nchw, params, stride=1, block_m=512):
    x = jnp.transpose(x_nchw, (0, 2, 3, 1)).astype(jnp.float32)   # NHWC
    N, H, W, C = x.shape

    # conv_a -> bn_a -> relu1 (one fused Pallas kernel)
    p1, (n, ho, wo) = im2col_3x3(x, stride)
    wa, ba = fold_bn_into_weight(torch_weight_to_matmul(params["conv_a_w"]),
                                 params["bn_a_gamma"], params["bn_a_beta"],
                                 params["bn_a_mean"], params["bn_a_var"])
    y1 = fused_conv_bn_act(p1, wa, ba, params["alpha1"], block_m=block_m)
    y1 = y1.reshape(n, ho, wo, -1)

    # conv_b -> bn_b -> (+residual) -> relu2 (one fused Pallas kernel)
    p2, _ = im2col_3x3(y1, 1)
    wb, bb = fold_bn_into_weight(torch_weight_to_matmul(params["conv_b_w"]),
                                 params["bn_b_gamma"], params["bn_b_beta"],
                                 params["bn_b_mean"], params["bn_b_var"])
    # downsample is None -> identity skip (stride == 1 and inplanes == planes)
    residual = x.reshape(N * H * W, C)
    y2 = fused_conv_bn_act(p2, wb, bb, params["alpha2"], residual=residual,
                           block_m=block_m)
    y2 = y2.reshape(n, ho, wo, -1)

    return jnp.transpose(y2, (0, 3, 1, 2))             # back to NCHW


# --------------------------------- main ------------------------------------ #

if __name__ == "__main__":
    key = jax.random.PRNGKey(0)
    ks = jax.random.split(key, 8)

    batch, inplanes, planes, H, W = 2, 8, 8, 16, 16
    stride = 1  # downsample is None -> identity residual

    params = {
        "conv_a_w": 0.1 * jax.random.normal(ks[0], (planes, inplanes, 3, 3), jnp.float32),
        "conv_b_w": 0.1 * jax.random.normal(ks[1], (planes, planes, 3, 3), jnp.float32),
        "bn_a_gamma": 1.0 + 0.05 * jax.random.normal(ks[2], (planes,), jnp.float32),
        "bn_a_beta": 0.05 * jax.random.normal(ks[3], (planes,), jnp.float32),
        "bn_a_mean": 0.01 * jax.random.normal(ks[4], (planes,), jnp.float32),
        "bn_a_var": jnp.abs(1.0 + 0.05 * jax.random.normal(ks[5], (planes,), jnp.float32)),
        "bn_b_gamma": 1.0 + 0.05 * jax.random.normal(ks[6], (planes,), jnp.float32),
        "bn_b_beta": 0.05 * jax.random.normal(ks[7], (planes,), jnp.float32),
        "bn_b_mean": jnp.zeros((planes,), jnp.float32),
        "bn_b_var": jnp.ones((planes,), jnp.float32),
        "alpha1": jnp.array([10.0], jnp.float32),   # ClippedReLU alpha_init
        "alpha2": jnp.array([10.0], jnp.float32),
    }

    x = jax.random.normal(jax.random.PRNGKey(42), (batch, inplanes, H, W), jnp.float32)

    # Small demo shapes -> block_m=256 so the grid has >1 step (production:
    # 512-1024 per the tiling sweep; both fit v7x's 64 MiB VMEM comfortably).
    out = resnet_basicblock_forward(x, params, stride=stride, block_m=256)
    out = jax.block_until_ready(out)
    assert out.shape == (batch, planes, H // stride, W // stride)
    assert bool(jnp.all(jnp.isfinite(out)))
    print("KERNEL_OK")
</pallas_src>

<mosaic_0001>
module attributes {stable_mosaic.version = 11 : i64} {
  func.func @_conv_bn_act_kernel(%arg0: i32, %arg1: memref<3xf32, #tpu.memory_space<smem>>, %arg2: memref<256x128xbf16, #tpu.memory_space<vmem>>, %arg3: memref<128x128xbf16, #tpu.memory_space<vmem>>, %arg4: memref<1x128xf32, #tpu.memory_space<vmem>>, %arg5: memref<256x128xf32, #tpu.memory_space<vmem>>) attributes {dimension_semantics = [#tpu.dimension_semantics<parallel>], iteration_bounds = array<i64: 2>, scalar_prefetch = 0 : i64, scratch_operands = 0 : i64, tpu.core_type = #tpu.core_type<tc>, window_params = [{transform_indices = @transform_0, window_bounds = array<i64: 3>}, {transform_indices = @transform_1, window_bounds = array<i64: 256, 128>}, {pipeline_mode = #tpu.pipeline_mode<synchronous>, transform_indices = @transform_2, window_bounds = array<i64: 128, 128>}, {pipeline_mode = #tpu.pipeline_mode<synchronous>, transform_indices = @transform_3, window_bounds = array<i64: 1, 128>}, {transform_indices = @transform_4, window_bounds = array<i64: 256, 128>}]} {
    %c0 = arith.constant 0 : index
    %c0_0 = arith.constant 0 : index
    %0 = vector.load %arg2[%c0, %c0_0] : memref<256x128xbf16, #tpu.memory_space<vmem>>, vector<256x128xbf16>
    %c0_1 = arith.constant 0 : index
    %c0_2 = arith.constant 0 : index
    %1 = vector.load %arg3[%c0_1, %c0_2] : memref<128x128xbf16, #tpu.memory_space<vmem>>, vector<128x128xbf16>
    %cst = arith.constant dense<0.000000e+00> : vector<256x128xf32>
    %2 = tpu.matmul %0, %1, %cst {dimension_numbers = #tpu.dot_dimension_numbers<[1], [0], [0], [1], [0, 0, 1, 1], [], []>} : vector<256x128xbf16>, vector<128x128xbf16>, vector<256x128xf32> -> vector<256x128xf32>
    %c0_3 = arith.constant 0 : index
    %c0_4 = arith.constant 0 : index
    %3 = vector.load %arg4[%c0_3, %c0_4] : memref<1x128xf32, #tpu.memory_space<vmem>>, vector<1x128xf32>
    %4 = vector.broadcast %3 : vector<1x128xf32> to vector<256x128xf32>
    %5 = arith.addf %2, %4 : vector<256x128xf32>
    %c0_5 = arith.constant 0 : index
    %6 = memref.load %arg1[%c0_5] : memref<3xf32, #tpu.memory_space<smem>>
    %cst_6 = arith.constant 0.000000e+00 : f32
    %7 = vector.broadcast %cst_6 : f32 to vector<256x128xf32>
    %8 = arith.maximumf %7, %5 : vector<256x128xf32>
    %9 = vector.broadcast %6 : f32 to vector<256x128xf32>
    %10 = arith.minimumf %9, %8 : vector<256x128xf32>
    %c1 = arith.constant 1 : index
    %11 = memref.load %arg1[%c1] : memref<3xf32, #tpu.memory_space<smem>>
    %12 = vector.broadcast %11 : f32 to vector<256x128xf32>
    %13 = arith.mulf %10, %12 : vector<256x128xf32>
    %14 = math.roundeven %13 : vector<256x128xf32>
    %c2 = arith.constant 2 : index
    %15 = memref.load %arg1[%c2] : memref<3xf32, #tpu.memory_space<smem>>
    %16 = vector.broadcast %15 : f32 to vector<256x128xf32>
    %17 = arith.mulf %14, %16 : vector<256x128xf32>
    %c0_7 = arith.constant 0 : index
    %c0_8 = arith.constant 0 : index
    %18 = vector.load %arg5[%c0_7, %c0_8] : memref<256x128xf32, #tpu.memory_space<vmem>>, vector<256x128xf32>
    tpu.vector_store %arg5[%c0_7, %c0_8], %17 {strides = array<i32>} : memref<256x128xf32, #tpu.memory_space<vmem>>, vector<256x128xf32>,
    return
  }
  func.func @transform_0(%arg0: i32) -> i32 {
    %c0_i32 = arith.constant 0 : i32
    %c0_i32_0 = arith.constant 0 : i32
    return %c0_i32 : i32
  }
  func.func @transform_1(%arg0: i32) -> (i32, i32) {
    %c0_i32 = arith.constant 0 : i32
    %c0_i32_0 = arith.constant 0 : i32
    return %arg0, %c0_i32 : i32, i32
  }
  func.func @transform_2(%arg0: i32) -> (i32, i32) {
    %c0_i32 = arith.constant 0 : i32
    %c0_i32_0 = arith.constant 0 : i32
    %c0_i32_1 = arith.constant 0 : i32
    return %c0_i32, %c0_i32_0 : i32, i32
  }
  func.func @transform_3(%arg0: i32) -> (i32, i32) {
    %c0_i32 = arith.constant 0 : i32
    %c0_i32_0 = arith.constant 0 : i32
    %c0_i32_1 = arith.constant 0 : i32
    return %c0_i32, %c0_i32_0 : i32, i32
  }
  func.func @transform_4(%arg0: i32) -> (i32, i32) {
    %c0_i32 = arith.constant 0 : i32
    %c0_i32_0 = arith.constant 0 : i32
    return %arg0, %c0_i32 : i32, i32
  }
}

module attributes {stable_mosaic.version = 11 : i64} {
  func.func @_conv_bn_res_act_kernel(%arg0: i32, %arg1: memref<3xf32, #tpu.memory_space<smem>>, %arg2: memref<256x128xbf16, #tpu.memory_space<vmem>>, %arg3: memref<128x128xbf16, #tpu.memory_space<vmem>>, %arg4: memref<1x128xf32, #tpu.memory_space<vmem>>, %arg5: memref<256x128xf32, #tpu.memory_space<vmem>>, %arg6: memref<256x128xf32, #tpu.memory_space<vmem>>) attributes {dimension_semantics = [#tpu.dimension_semantics<parallel>], iteration_bounds = array<i64: 2>, scalar_prefetch = 0 : i64, scratch_operands = 0 : i64, tpu.core_type = #tpu.core_type<tc>, window_params = [{transform_indices = @transform_0, window_bounds = array<i64: 3>}, {transform_indices = @transform_1, window_bounds = array<i64: 256, 128>}, {pipeline_mode = #tpu.pipeline_mode<synchronous>, transform_indices = @transform_2, window_bounds = array<i64: 128, 128>}, {pipeline_mode = #tpu.pipeline_mode<synchronous>, transform_indices = @transform_3, window_bounds = array<i64: 1, 128>}, {transform_indices = @transform_4, window_bounds = array<i64: 256, 128>}, {transform_indices = @transform_5, window_bounds = array<i64: 256, 128>}]} {
    %c0 = arith.constant 0 : index
    %c0_0 = arith.constant 0 : index
    %0 = vector.load %arg2[%c0, %c0_0] : memref<256x128xbf16, #tpu.memory_space<vmem>>, vector<256x128xbf16>
    %c0_1 = arith.constant 0 : index
    %c0_2 = arith.constant 0 : index
    %1 = vector.load %arg3[%c0_1, %c0_2] : memref<128x128xbf16, #tpu.memory_space<vmem>>, vector<128x128xbf16>
    %cst = arith.constant dense<0.000000e+00> : vector<256x128xf32>
    %2 = tpu.matmul %0, %1, %cst {dimension_numbers = #tpu.dot_dimension_numbers<[1], [0], [0], [1], [0, 0, 1, 1], [], []>} : vector<256x128xbf16>, vector<128x128xbf16>, vector<256x128xf32> -> vector<256x128xf32>
    %c0_3 = arith.constant 0 : index
    %c0_4 = arith.constant 0 : index
    %3 = vector.load %arg4[%c0_3, %c0_4] : memref<1x128xf32, #tpu.memory_space<vmem>>, vector<1x128xf32>
    %4 = vector.broadcast %3 : vector<1x128xf32> to vector<256x128xf32>
    %5 = arith.addf %2, %4 : vector<256x128xf32>
    %c0_5 = arith.constant 0 : index
    %c0_6 = arith.constant 0 : index
    %6 = vector.load %arg5[%c0_5, %c0_6] : memref<256x128xf32, #tpu.memory_space<vmem>>, vector<256x128xf32>
    %7 = arith.addf %5, %6 : vector<256x128xf32>
    %c0_7 = arith.constant 0 : index
    %8 = memref.load %arg1[%c0_7] : memref<3xf32, #tpu.memory_space<smem>>
    %cst_8 = arith.constant 0.000000e+00 : f32
    %9 = vector.broadcast %cst_8 : f32 to vector<256x128xf32>
    %10 = arith.maximumf %9, %7 : vector<256x128xf32>
    %11 = vector.broadcast %8 : f32 to vector<256x128xf32>
    %12 = arith.minimumf %11, %10 : vector<256x128xf32>
    %c1 = arith.constant 1 : index
    %13 = memref.load %arg1[%c1] : memref<3xf32, #tpu.memory_space<smem>>
    %14 = vector.broadcast %13 : f32 to vector<256x128xf32>
    %15 = arith.mulf %12, %14 : vector<256x128xf32>
    %16 = math.roundeven %15 : vector<256x128xf32>
    %c2 = arith.constant 2 : index
    %17 = memref.load %arg1[%c2] : memref<3xf32, #tpu.memory_space<smem>>
    %18 = vector.broadcast %17 : f32 to vector<256x128xf32>
    %19 = arith.mulf %16, %18 : vector<256x128xf32>
    %c0_9 = arith.constant 0 : index
    %c0_10 = arith.constant 0 : index
    %20 = vector.load %arg6[%c0_9, %c0_10] : memref<256x128xf32, #tpu.memory_space<vmem>>, vector<256x128xf32>
    tpu.vector_store %arg6[%c0_9, %c0_10], %19 {strides = array<i32>} : memref<256x128xf32, #tpu.memory_space<vmem>>, vector<256x128xf32>,
    return
  }
  func.func @transform_0(%arg0: i32) -> i32 {
    %c0_i32 = arith.constant 0 : i32
    %c0_i32_0 = arith.constant 0 : i32
    return %c0_i32 : i32
  }
  func.func @transform_1(%arg0: i32) -> (i32, i32) {
    %c0_i32 = arith.constant 0 : i32
    %c0_i32_0 = arith.constant 0 : i32
    return %arg0, %c0_i32 : i32, i32
  }
  func.func @transform_2(%arg0: i32) -> (i32, i32) {
    %c0_i32 = arith.constant 0 : i32
    %c0_i32_0 = arith.constant 0 : i32
    %c0_i32_1 = arith.constant 0 : i32
    return %c0_i32, %c0_i32_0 : i32, i32
  }
  func.func @transform_3(%arg0: i32) -> (i32, i32) {
    %c0_i32 = arith.constant 0 : i32
    %c0_i32_0 = arith.constant 0 : i32
    %c0_i32_1 = arith.constant 0 : i32
    return %c0_i32, %c0_i32_0 : i32, i32
  }
  func.func @transform_4(%arg0: i32) -> (i32, i32) {
    %c0_i32 = arith.constant 0 : i32
    %c0_i32_0 = arith.constant 0 : i32
    return %arg0, %c0_i32 : i32, i32
  }
  func.func @transform_5(%arg0: i32) -> (i32, i32) {
    %c0_i32 = arith.constant 0 : i32
    %c0_i32_0 = arith.constant 0 : i32
    return %arg0, %c0_i32 : i32, i32
  }
}

</mosaic_0001>

<llo_original>
// kernel: resnet_basicblock_forward.2
$region0: #{resnet_basicblock_forward.2}
  #allocation0 [shape = 'u32[]', space=smem, size = 0x4, offset = 0x4, fixed_abs, tag = 'smem constant byte address 0x4 - core index']
  #allocation1 [shape = 'u32[144,128]{1,0:T(1,128)}', space=vmem, size = 0x12000, scoped, tag = 'internal scratch']
  %s0 = inlined_call_operand.vmem [shape: f32[3], index: 0, kind: input, shape index: {}]
  %s1 = inlined_call_operand.vmem [shape: bf16[512,128], index: 1, kind: input, shape index: {}]
  %s2 = inlined_call_operand.vmem [shape: bf16[128,128], index: 2, kind: input, shape index: {}]
  %s3 = inlined_call_operand.vmem [shape: f32[1,128], index: 3, kind: input, shape index: {}]
  %s4 = inlined_call_operand.vmem [shape: f32[512,128], index: 4, kind: output, shape index: {}]
  %s5 = sld [smem:[#allocation0]]
  $region53: #{resnet_basicblock_forward.2} parent=0
    _
  %s7 = ssub.s32 1, %s5
  %s8 = scalar_select 0, %s7, %s5
  $region1: #{resnet_basicblock_forward.2} parent=0
    #allocation2 [shape = 'u8[512]{0}', space=smem, size = 0x200, scoped, tag = 'input window, operand 0, single buffered']
    #allocation3 [shape = 's32[2]{0}', space=sflag, size = 0x8, scoped, tag = 'scoped memory for resnet_basicblock_forward.2']
    %9 = vsyncpa [#allocation3], 0
    loop: start=0, step=1, limit=4
    $region2: #{resnet_basicblock_forward.2} parent=1 // loop_pre_header
      _
    $region3: #{resnet_basicblock_forward.2} parent=1 // loop_header
      %s11 = sphi 0, %s15
      %p12 = scmp.ge.s32.totalorder %s11, 4
      %s19 = sphi 0, %s19
      %s21 = sphi 0, %s19
      %s22 = sphi 0, %s21
      %s36 = sphi 0, %s22
      %s42 = sphi 0, %s44
      %s45 = sphi 0, %s42
      %s46 = sphi 0, %s45
      %s62 = sphi 0, %s46
      %s66 = sphi 0, %s66
      %s68 = sphi 0, %s66
      %s69 = sphi 0, %s68
      %s83 = sphi 0, %s69
      %s87 = sphi 0, %s87
      %s89 = sphi 0, %s87
      %s90 = sphi 0, %s89
      %s104 = sphi 0, %s90
      %s110 = sphi 0, %s112
      %s113 = sphi 0, %s110
      %s114 = sphi 0, %s113
      %s130 = sphi 0, %s114
    $region4: #{resnet_basicblock_forward.2} parent=1 // loop_header_branch
      %14 = sbr.rel (%p12) target = $region8
    $region5: #{resnet_basicblock_forward.2} parent=1 // loop_body
      %s16 = ssub.s32 %s11, 1
      %s17 = ssub.s32 %s11, 2
      %s18 = sadd.s32 %s11, 1
      %s20 = sadd.s32 %s19, 1
      %p23 = scmp.eq.s32.totalorder %s11, 1
      %p24 = scmp.ne.s32.totalorder %s19, %s21
      %p25 = scmp.eq.s32.totalorder %s11, 0
      %p26 = por %p24, %p25
      %p27 = scmp.ne.s32.totalorder %s19, %s21
      %p28 = scmp.eq.s32.totalorder %s16, 1
      %p29 = por %p27, %p28
      %p30 = scmp.ne.s32.totalorder %s21, %s22
      %p31 = scmp.eq.s32.totalorder %s16, 0
      %p32 = por %p30, %p31
      %p33 = scmp.ne.s32.totalorder %s21, %s22
      %p34 = scmp.eq.s32.totalorder %s17, 1
      %p35 = por %p33, %p34
      %p37 = scmp.ne.s32.totalorder %s22, %s36
      %p38 = scmp.eq.s32.totalorder %s17, 0
      %p39 = por %p37, %p38
      %s40 = ssub.s32 %s11, %s18
      %p41 = scmp.eq.s32.totalorder %s40, 0
      %s43 = sadd.s32 %s42, 1
      %s44 = scalar_select %p41, %s42, %s43
      %p47 = pneg %p41
      %p48 = scmp.eq.s32.totalorder %s11, 1
      %p49 = por %p47, %p48
      %p50 = scmp.ne.s32.totalorder %s42, %s45
      %p51 = scmp.eq.s32.totalorder %s11, 0
      %p52 = por %p50, %p51
      %p53 = scmp.ne.s32.totalorder %s42, %s45
      %p54 = scmp.eq.s32.totalorder %s16, 1
      %p55 = por %p53, %p54
      %p56 = scmp.ne.s32.totalorder %s45, %s46
      %p57 = scmp.eq.s32.totalorder %s16, 0
      %p58 = por %p56, %p57
      %p59 = scmp.ne.s32.totalorder %s45, %s46
      %p60 = scmp.eq.s32.totalorder %s17, 1
      %p61 = por %p59, %p60
      %p63 = scmp.ne.s32.totalorder %s46, %s62
      %p64 = scmp.eq.s32.totalorder %s17, 0
      %p65 = por %p63, %p64
      %s67 = sadd.s32 %s66, 1
      %p70 = scmp.eq.s32.totalorder %s11, 1
      %p71 = scmp.ne.s32.totalorder %s66, %s68
      %p72 = scmp.eq.s32.totalorder %s11, 0
      %p73 = por %p71, %p72
      %p74 = scmp.ne.s32.totalorder %s66, %s68
      %p75 = scmp.eq.s32.totalorder %s16, 1
      %p76 = por %p74, %p75
      %p77 = scmp.ne.s32.totalorder %s68, %s69
      %p78 = scmp.eq.s32.totalorder %s16, 0
      %p79 = por %p77, %p78
      %p80 = scmp.ne.s32.totalorder %s68, %s69
      %p81 = scmp.eq.s32.totalorder %s17, 1
      %p82 = por %p80, %p81
      %p84 = scmp.ne.s32.totalorder %s69, %s83
      %p85 = scmp.eq.s32.totalorder %s17, 0
      %p86 = por %p84, %p85
      %s88 = sadd.s32 %s87, 1
      %p91 = scmp.eq.s32.totalorder %s11, 1
      %p92 = scmp.ne.s32.totalorder %s87, %s89
      %p93 = scmp.eq.s32.totalorder %s11, 0
      %p94 = por %p92, %p93
      %p95 = scmp.ne.s32.totalorder %s87, %s89
      %p96 = scmp.eq.s32.totalorder %s16, 1
      %p97 = por %p95, %p96
      %p98 = scmp.ne.s32.totalorder %s89, %s90
      %p99 = scmp.eq.s32.totalorder %s16, 0
      %p100 = por %p98, %p99
      %p101 = scmp.ne.s32.totalorder %s89, %s90
      %p102 = scmp.eq.s32.totalorder %s17, 1
      %p103 = por %p101, %p102
      %p105 = scmp.ne.s32.totalorder %s90, %s104
      %p106 = scmp.eq.s32.totalorder %s17, 0
      %p107 = por %p105, %p106
      %s108 = ssub.s32 %s11, %s18
      %p109 = scmp.eq.s32.totalorder %s108, 0
      %s111 = sadd.s32 %s110, 1
      %s112 = scalar_select %p109, %s110, %s111
      %p115 = pneg %p109
      %p116 = scmp.eq.s32.totalorder %s11, 1
      %p117 = por %p115, %p116
      %p118 = scmp.ne.s32.totalorder %s110, %s113
      %p119 = scmp.eq.s32.totalorder %s11, 0
      %p120 = por %p118, %p119
      %p121 = scmp.ne.s32.totalorder %s110, %s113
      %p122 = scmp.eq.s32.totalorder %s16, 1
      %p123 = por %p121, %p122
      %p124 = scmp.ne.s32.totalorder %s113, %s114
      %p125 = scmp.eq.s32.totalorder %s16, 0
      %p126 = por %p124, %p125
      %p127 = scmp.ne.s32.totalorder %s113, %s114
      %p128 = scmp.eq.s32.totalorder %s17, 1
      %p129 = por %p127, %p128
      %p131 = scmp.ne.s32.totalorder %s114, %s130
      %p132 = scmp.eq.s32.totalorder %s17, 0
      %p133 = por %p131, %p132
      %p134 = scmp.le.s32.totalorder 1, %s11
      %p135 = scmp.lt.s32.totalorder %s11, 3
      %p136 = pnand %p134, %p135
      %p137 = pneg %p136
      // Predicated region
      $region9: #{resnet_basicblock_forward.2} parent=5 // pred_check
        _
      $region10: #{resnet_basicblock_forward.2} parent=5 // pred_check_branch
        %139 = sbr.rel (%p136) target = $region12
      $region11: #{resnet_basicblock_forward.2} parent=5 // pred_region
        %s140 = ssub.s32 %s11, 1
        // Predicated region
        $region13: #{resnet_basicblock_forward.2} parent=11 // pred_check
          %p141 = pneg %p32
        $region14: #{resnet_basicblock_forward.2} parent=11 // pred_check_branch
          %143 = sbr.rel (%p141) target = $region16
        $region15: #{resnet_basicblock_forward.2} parent=11 // pred_region
          %s145 = ssub.s32 16, 16
          %146 = vsyncadd [#allocation3], %s145
          %s148 = sshll.u32 %s0, 4
          %s149 = int_to_ptr.vmem [resolvable:$true] %s148
          %151 = dma.vmem_to_smem %s149, 16, [#allocation2], [#allocation3]
        $region16: #{resnet_basicblock_forward.2} parent=11 // pred_fallthru
          _
        // Predicated region
        $region17: #{resnet_basicblock_forward.2} parent=11 // pred_check
          %p152 = pneg %p79
        $region18: #{resnet_basicblock_forward.2} parent=11 // pred_check_branch
          %154 = sbr.rel (%p152) target = $region20
        $region19: #{resnet_basicblock_forward.2} parent=11 // pred_region
          _
        $region20: #{resnet_basicblock_forward.2} parent=11 // pred_fallthru
          _
        // Predicated region
        $region21: #{resnet_basicblock_forward.2} parent=11 // pred_check
          %p155 = pneg %p100
        $region22: #{resnet_basicblock_forward.2} parent=11 // pred_check_branch
          %157 = sbr.rel (%p155) target = $region24
        $region23: #{resnet_basicblock_forward.2} parent=11 // pred_region
          _
        $region24: #{resnet_basicblock_forward.2} parent=11 // pred_fallthru
          _
      $region12: #{resnet_basicblock_forward.2} parent=5 // pred_fallthru
        _
      %p158 = scmp.lt.s32.totalorder %s11, 2
      // Predicated region
      $region25: #{resnet_basicblock_forward.2} parent=5 // pred_check
        %p159 = pneg %p158
      $region26: #{resnet_basicblock_forward.2} parent=5 // pred_check_branch
        %161 = sbr.rel (%p159) target = $region28
      $region27: #{resnet_basicblock_forward.2} parent=5 // pred_region
        // Predicated region
        $region29: #{resnet_basicblock_forward.2} parent=27 // pred_check
          %p162 = pneg %p52
        $region30: #{resnet_basicblock_forward.2} parent=27 // pred_check_branch
          %164 = sbr.rel (%p162) target = $region32
        $region31: #{resnet_basicblock_forward.2} parent=27 // pred_region
          %s165 = smul.u32 32, %s11
          %p166 = scmp.lt.s32.totalorder %s165, 63
          %s167 = scalar_select %p166, %s165, 63
          %s168 = smul.addr %s167, 4
          %s169 = scalar_lea.vmem %s1, %s168
          %s170 = smul.u32 32, %s11
        $region32: #{resnet_basicblock_forward.2} parent=27 // pred_fallthru
          _
      $region28: #{resnet_basicblock_forward.2} parent=5 // pred_fallthru
        _
      %p171 = scmp.le.s32.totalorder 1, %s11
      %p172 = scmp.lt.s32.totalorder %s11, 3
      %p173 = pnand %p171, %p172
      %p174 = pneg %p173
      // Predicated region
      $region33: #{resnet_basicblock_forward.2} parent=5 // pred_check
        _
      $region34: #{resnet_basicblock_forward.2} parent=5 // pred_check_branch
        %176 = sbr.rel (%p173) target = $region36
      $region35: #{resnet_basicblock_forward.2} parent=5 // pred_region
        %s177 = ssub.s32 %s11, 1
        // Predicated region
        $region37: #{resnet_basicblock_forward.2} parent=35 // pred_check
          %p178 = pneg %p32
        $region38: #{resnet_basicblock_forward.2} parent=35 // pred_check_branch
          %180 = sbr.rel (%p178) target = $region40
        $region39: #{resnet_basicblock_forward.2} parent=35 // pred_region
          %181 = dma.done [#allocation3], 16
        $region40: #{resnet_basicblock_forward.2} parent=35 // pred_fallthru
          _
        %182 = sfence
        %p183 = pneg %p32
        %p184 = pneg %p29
        %s185 = smul.u32 32, %s16
        %p186 = scmp.lt.s32.totalorder %s185, 63
        %s187 = scalar_select %p186, %s185, 63
        %s188 = smul.addr %s187, 4
        %s189 = scalar_lea.vmem %s1, %s188
        %p190 = pneg %p58
        %p191 = pneg %p55
        %p192 = pneg %p79
        %p193 = pneg %p76
        %p194 = pneg %p100
        %p195 = pneg %p97
        %p196 = pneg %p126
        %p197 = pneg %p123
        %s198 = smul.u32 32, %s16
        %p199 = scmp.lt.s32.totalorder %s198, 63
        %s200 = scalar_select %p199, %s198, 63
        %s201 = smul.addr %s200, 8
        %s202 = scalar_lea.vmem %s4, %s201
        %s203 = smul.u32 32, %s16
        %p204 = scmp.lt.s32.totalorder %s203, 63
        %s205 = scalar_select %p204, %s203, 63
        %s206 = smul.addr %s205, 4
        %s207 = scalar_lea.vmem %s1, %s206
        %s208 = smul.u32 32, %s16
        %s209 = smul.u32 32, %s16
        %p210 = scmp.lt.s32.totalorder %s209, 63
        %s211 = scalar_select %p210, %s209, 63
        %s212 = smul.addr %s211, 8
        %s213 = scalar_lea.vmem %s4, %s212
        %s214 = smul.u32 32, %s16
        %v216 = vld [vmem:[%s207] sm:$0xf]
        %v217 = vld [vmem:[%s207 + $0x4] sm:$0xf]
        %v218 = vld [vmem:[%s207 + $0x8] sm:$0xf]
        %v219 = vld [vmem:[%s207 + $0xc] sm:$0xf]
        %v220 = vld [vmem:[%s207 + $0x10] sm:$0xf]
        %v221 = vld [vmem:[%s207 + $0x14] sm:$0xf]
        %v222 = vld [vmem:[%s207 + $0x18] sm:$0xf]
        %v223 = vld [vmem:[%s207 + $0x1c] sm:$0xf]
        %v224 = vld [vmem:[%s207 + $0x20] sm:$0xf]
        %v225 = vld [vmem:[%s207 + $0x24] sm:$0xf]
        %v226 = vld [vmem:[%s207 + $0x28] sm:$0xf]
        %v227 = vld [vmem:[%s207 + $0x2c] sm:$0xf]
        %v228 = vld [vmem:[%s207 + $0x30] sm:$0xf]
        %v229 = vld [vmem:[%s207 + $0x34] sm:$0xf]
        %v230 = vld [vmem:[%s207 + $0x38] sm:$0xf]
        %v231 = vld [vmem:[%s207 + $0x3c] sm:$0xf]
        %v232 = vld [vmem:[%s207 + $0x40] sm:$0xf]
        %v233 = vld [vmem:[%s207 + $0x44] sm:$0xf]
        %v234 = vld [vmem:[%s207 + $0x48] sm:$0xf]
        %v235 = vld [vmem:[%s207 + $0x4c] sm:$0xf]
        %v236 = vld [vmem:[%s207 + $0x50] sm:$0xf]
        %v237 = vld [vmem:[%s207 + $0x54] sm:$0xf]
        %v238 = vld [vmem:[%s207 + $0x58] sm:$0xf]
        %v239 = vld [vmem:[%s207 + $0x5c] sm:$0xf]
        %v240 = vld [vmem:[%s207 + $0x60] sm:$0xf]
        %v241 = vld [vmem:[%s207 + $0x64] sm:$0xf]
        %v242 = vld [vmem:[%s207 + $0x68] sm:$0xf]
        %v243 = vld [vmem:[%s207 + $0x6c] sm:$0xf]
        %v244 = vld [vmem:[%s207 + $0x70] sm:$0xf]
        %v245 = vld [vmem:[%s207 + $0x74] sm:$0xf]
        %v246 = vld [vmem:[%s207 + $0x78] sm:$0xf]
        %v247 = vld [vmem:[%s207 + $0x7c] sm:$0xf]
        %v248 = vld [vmem:[%s2] sm:$0xf]
        %v249 = vld [vmem:[%s2 + $0x4] sm:$0xf]
        %v250 = vld [vmem:[%s2 + $0x8] sm:$0xf]
        %v251 = vld [vmem:[%s2 + $0xc] sm:$0xf]
        %v252 = vld [vmem:[%s2 + $0x10] sm:$0xf]
        %v253 = vld [vmem:[%s2 + $0x14] sm:$0xf]
        %v254 = vld [vmem:[%s2 + $0x18] sm:$0xf]
        %v255 = vld [vmem:[%s2 + $0x1c] sm:$0xf]
        %v256 = vld [vmem:[%s2 + $0x20] sm:$0xf]
        %v257 = vld [vmem:[%s2 + $0x24] sm:$0xf]
        %v258 = vld [vmem:[%s2 + $0x28] sm:$0xf]
        %v259 = vld [vmem:[%s2 + $0x2c] sm:$0xf]
        %v260 = vld [vmem:[%s2 + $0x30] sm:$0xf]
        %v261 = vld [vmem:[%s2 + $0x34] sm:$0xf]
        %v262 = vld [vmem:[%s2 + $0x38] sm:$0xf]
        %v263 = vld [vmem:[%s2 + $0x3c] sm:$0xf]
        %v264 = vld [vmem:[%s3] sm:$0x1]
        %v266 = vlaneseq
        %v267 = vshrl.u32 %v266, 7
        %v268 = vsub.s32 0, %v267
        %v269 = vrot.slane %v264, %v268
        %v303 = vunpack.c.l.b16 %v216
        %v304 = vunpack.c.l.b16 %v217
        %v305 = vunpack.c.l.b16 %v218
        %v306 = vunpack.c.l.b16 %v219
        %v307 = vunpack.c.l.b16 %v220
        %v308 = vunpack.c.l.b16 %v221
        %v309 = vunpack.c.l.b16 %v222
        %v310 = vunpack.c.l.b16 %v223
        %v311 = vunpack.c.l.b16 %v224
        %v312 = vunpack.c.l.b16 %v225
        %v313 = vunpack.c.l.b16 %v226
        %v314 = vunpack.c.l.b16 %v227
        %v315 = vunpack.c.l.b16 %v228
        %v316 = vunpack.c.l.b16 %v229
        %v317 = vunpack.c.l.b16 %v230
        %v318 = vunpack.c.l.b16 %v231
        %v319 = vunpack.c.l.b16 %v232
        %v320 = vunpack.c.l.b16 %v233
        %v321 = vunpack.c.l.b16 %v234
        %v322 = vunpack.c.l.b16 %v235
        %v323 = vunpack.c.l.b16 %v236
        %v324 = vunpack.c.l.b16 %v237
        %v325 = vunpack.c.l.b16 %v238
        %v326 = vunpack.c.l.b16 %v239
        %v327 = vunpack.c.l.b16 %v240
        %v328 = vunpack.c.l.b16 %v241
        %v329 = vunpack.c.l.b16 %v242
        %v330 = vunpack.c.l.b16 %v243
        %v331 = vunpack.c.l.b16 %v244
        %v332 = vunpack.c.l.b16 %v245
        %v333 = vunpack.c.l.b16 %v246
        %v334 = vunpack.c.l.b16 %v247
        %v335 = vpack.c.b16 %v304, %v303
        %v336 = vpack.c.b16 %v306, %v305
        %v337 = vpack.c.b16 %v308, %v307
        %v338 = vpack.c.b16 %v310, %v309
        %v339 = vpack.c.b16 %v312, %v311
        %v340 = vpack.c.b16 %v314, %v313
        %v341 = vpack.c.b16 %v316, %v315
        %v342 = vpack.c.b16 %v318, %v317
        %v343 = vpack.c.b16 %v320, %v319
        %v344 = vpack.c.b16 %v322, %v321
        %v345 = vpack.c.b16 %v324, %v323
        %v346 = vpack.c.b16 %v326, %v325
        %v347 = vpack.c.b16 %v328, %v327
        %v348 = vpack.c.b16 %v330, %v329
        %v349 = vpack.c.b16 %v332, %v331
        %v350 = vpack.c.b16 %v334, %v333
        %v383 = vunpack.c.l.b16 %v248
        %v384 = vunpack.c.l.b16 %v249
        %v385 = vunpack.c.l.b16 %v250
        %v386 = vunpack.c.l.b16 %v251
        %v387 = vunpack.c.l.b16 %v252
        %v388 = vunpack.c.l.b16 %v253
        %v389 = vunpack.c.l.b16 %v254
        %v390 = vunpack.c.l.b16 %v255
        %v391 = vunpack.c.l.b16 %v256
        %v392 = vunpack.c.l.b16 %v257
        %v393 = vunpack.c.l.b16 %v258
        %v394 = vunpack.c.l.b16 %v259
        %v395 = vunpack.c.l.b16 %v260
        %v396 = vunpack.c.l.b16 %v261
        %v397 = vunpack.c.l.b16 %v262
        %v398 = vunpack.c.l.b16 %v263
        %v399 = vpack.c.b16 %v384, %v383
        %v400 = vpack.c.b16 %v386, %v385
        %v401 = vpack.c.b16 %v388, %v387
        %v402 = vpack.c.b16 %v390, %v389
        %v403 = vpack.c.b16 %v392, %v391
        %v404 = vpack.c.b16 %v394, %v393
        %v405 = vpack.c.b16 %v396, %v395
        %v406 = vpack.c.b16 %v398, %v397
        %415 = vmatprep.subr.bf16.mxu0 0
        %416 = vmatpush1.bf16.msra.mxu0 %v406
        %417 = vmatprep.subr.bf16.mxu0 0
        %418 = vmatpush1.bf16.msra.mxu0 %v405
        %419 = vmatprep.subr.bf16.mxu0 0
        %420 = vmatpush1.bf16.msra.mxu0 %v404
        %421 = vmatprep.subr.bf16.mxu0 0
        %422 = vmatpush1.bf16.msra.mxu0 %v403
        %423 = vmatprep.subr.bf16.mxu0 0
        %424 = vmatpush1.bf16.msra.mxu0 %v402
        %425 = vmatprep.subr.bf16.mxu0 0
        %426 = vmatpush1.bf16.msra.mxu0 %v401
        %427 = vmatprep.subr.bf16.mxu0 0
        %428 = vmatpush1.bf16.msra.mxu0 %v400
        %429 = vmatprep.subr.bf16.mxu0 0
        %430 = vmatpush1.bf16.msra.mxu0 %v399
        %431 = vmatprep.subr.bf16.mxu0 0
        %432 = vmatpush2.bf16.msra.mxu0 0
        %433 = vmatprep.subr.bf16.mxu0 0
        %434 = vmatpush2.bf16.msra.mxu0 0
        %435 = vmatprep.subr.bf16.mxu0 0
        %436 = vmatpush2.bf16.msra.mxu0 0
        %437 = vmatprep.subr.bf16.mxu0 0
        %438 = vmatpush2.bf16.msra.mxu0 0
        %439 = vmatprep.subr.bf16.mxu0 0
        %440 = vmatpush2.bf16.msra.mxu0 0
        %441 = vmatprep.subr.bf16.mxu0 0
        %442 = vmatpush2.bf16.msra.mxu0 0
        %443 = vmatprep.subr.bf16.mxu0 0
        %444 = vmatpush2.bf16.msra.mxu0 0
        %445 = vmatprep.subr.bf16.mxu0 0
        %446 = vmatpush2.bf16.msra.mxu0 0
        %447 = vmatprep.mubr.bf16.mxu0 0
        %448 = vmatmul.mubr.bf16.gmra.mxu0 %v335
        %v449 = vpop.f32.mrf.mxu0
        %v450 = vadd.f32 %v269, %v449
        %v451 = vpop.f32.mrf.mxu0
        %v452 = vpop.f32.mrf.mxu0
        %v453 = vadd.f32 %v269, %v452
        %v454 = vpop.f32.mrf.mxu0
        %455 = vmatprep.mubr.bf16.mxu0 0
        %456 = vmatmul.mubr.bf16.gmra.mxu0 %v336
        %v457 = vpop.f32.mrf.mxu0
        %v458 = vadd.f32 %v269, %v457
        %v459 = vpop.f32.mrf.mxu0
        %v460 = vpop.f32.mrf.mxu0
        %v461 = vadd.f32 %v269, %v460
        %v462 = vpop.f32.mrf.mxu0
        %463 = vmatprep.mubr.bf16.mxu0 0
        %464 = vmatmul.mubr.bf16.gmra.mxu0 %v337
        %v465 = vpop.f32.mrf.mxu0
        %v466 = vadd.f32 %v269, %v465
        %v467 = vpop.f32.mrf.mxu0
        %v468 = vpop.f32.mrf.mxu0
        %v469 = vadd.f32 %v269, %v468
        %v470 = vpop.f32.mrf.mxu0
        %471 = vmatprep.mubr.bf16.mxu0 0
        %472 = vmatmul.mubr.bf16.gmra.mxu0 %v338
        %v473 = vpop.f32.mrf.mxu0
        %v474 = vadd.f32 %v269, %v473
        %v475 = vpop.f32.mrf.mxu0
        %v476 = vpop.f32.mrf.mxu0
        %v477 = vadd.f32 %v269, %v476
        %v478 = vpop.f32.mrf.mxu0
        %479 = vmatprep.mubr.bf16.mxu0 0
        %480 = vmatmul.mubr.bf16.gmra.mxu0 %v339
        %v481 = vpop.f32.mrf.mxu0
        %v482 = vadd.f32 %v269, %v481
        %v483 = vpop.f32.mrf.mxu0
        %v484 = vpop.f32.mrf.mxu0
        %v485 = vadd.f32 %v269, %v484
        %v486 = vpop.f32.mrf.mxu0
        %487 = vmatprep.mubr.bf16.mxu0 0
        %488 = vmatmul.mubr.bf16.gmra.mxu0 %v340
        %v489 = vpop.f32.mrf.mxu0
        %v490 = vadd.f32 %v269, %v489
        %v491 = vpop.f32.mrf.mxu0
        %v492 = vpop.f32.mrf.mxu0
        %v493 = vadd.f32 %v269, %v492
        %v494 = vpop.f32.mrf.mxu0
        %495 = vmatprep.mubr.bf16.mxu0 0
        %496 = vmatmul.mubr.bf16.gmra.mxu0 %v341
        %v497 = vpop.f32.mrf.mxu0
        %v498 = vadd.f32 %v269, %v497
        %v499 = vpop.f32.mrf.mxu0
        %v500 = vpop.f32.mrf.mxu0
        %v501 = vadd.f32 %v269, %v500
        %v502 = vpop.f32.mrf.mxu0
        %503 = vmatprep.mubr.bf16.mxu0 0
        %504 = vmatmul.mubr.bf16.gmra.mxu0 %v342
        %v505 = vpop.f32.mrf.mxu0
        %v506 = vadd.f32 %v269, %v505
        %v507 = vpop.f32.mrf.mxu0
        %v508 = vpop.f32.mrf.mxu0
        %v509 = vadd.f32 %v269, %v508
        %v510 = vpop.f32.mrf.mxu0
        %511 = vmatprep.mubr.bf16.mxu0 0
        %512 = vmatmul.mubr.bf16.gmra.mxu0 %v343
        %v513 = vpop.f32.mrf.mxu0
        %v514 = vadd.f32 %v269, %v513
        %v515 = vpop.f32.mrf.mxu0
        %v516 = vpop.f32.mrf.mxu0
        %v517 = vadd.f32 %v269, %v516
        %v518 = vpop.f32.mrf.mxu0
        %519 = vmatprep.mubr.bf16.mxu0 0
        %520 = vmatmul.mubr.bf16.gmra.mxu0 %v344
        %v521 = vpop.f32.mrf.mxu0
        %v522 = vadd.f32 %v269, %v521
        %v523 = vpop.f32.mrf.mxu0
        %v524 = vpop.f32.mrf.mxu0
        %v525 = vadd.f32 %v269, %v524
        %v526 = vpop.f32.mrf.mxu0
        %527 = vmatprep.mubr.bf16.mxu0 0
        %528 = vmatmul.mubr.bf16.gmra.mxu0 %v345
        %v529 = vpop.f32.mrf.mxu0
        %v530 = vadd.f32 %v269, %v529
        %v531 = vpop.f32.mrf.mxu0
        %v532 = vpop.f32.mrf.mxu0
        %v533 = vadd.f32 %v269, %v532
        %v534 = vpop.f32.mrf.mxu0
        %535 = vmatprep.mubr.bf16.mxu0 0
        %536 = vmatmul.mubr.bf16.gmra.mxu0 %v346
        %v537 = vpop.f32.mrf.mxu0
        %v538 = vadd.f32 %v269, %v537
        %v539 = vpop.f32.mrf.mxu0
        %v540 = vpop.f32.mrf.mxu0
        %v541 = vadd.f32 %v269, %v540
        %v542 = vpop.f32.mrf.mxu0
        %543 = vmatprep.mubr.bf16.mxu0 0
        %544 = vmatmul.mubr.bf16.gmra.mxu0 %v347
        %v545 = vpop.f32.mrf.mxu0
        %v546 = vadd.f32 %v269, %v545
        %v547 = vpop.f32.mrf.mxu0
        %v548 = vpop.f32.mrf.mxu0
        %v549 = vadd.f32 %v269, %v548
        %v550 = vpop.f32.mrf.mxu0
        %551 = vmatprep.mubr.bf16.mxu0 0
        %552 = vmatmul.mubr.bf16.gmra.mxu0 %v348
        %v553 = vpop.f32.mrf.mxu0
        %v554 = vadd.f32 %v269, %v553
        %v555 = vpop.f32.mrf.mxu0
        %v556 = vpop.f32.mrf.mxu0
        %v557 = vadd.f32 %v269, %v556
        %v558 = vpop.f32.mrf.mxu0
        %559 = vmatprep.mubr.bf16.mxu0 0
        %560 = vmatmul.mubr.bf16.gmra.mxu0 %v349
        %v561 = vpop.f32.mrf.mxu0
        %v562 = vadd.f32 %v269, %v561
        %v563 = vpop.f32.mrf.mxu0
        %v564 = vpop.f32.mrf.mxu0
        %v565 = vadd.f32 %v269, %v564
        %v566 = vpop.f32.mrf.mxu0
        %567 = vmatprep.mubr.bf16.mxu0 0
        %568 = vmatmul.mubr.bf16.gmra.mxu0 %v350
        %v569 = vpop.f32.mrf.mxu0
        %v570 = vadd.f32 %v269, %v569
        %v571 = vpop.f32.mrf.mxu0
        %v572 = vpop.f32.mrf.mxu0
        %v573 = vadd.f32 %v269, %v572
        %v574 = vpop.f32.mrf.mxu0
        %575 = vdwg.mxu0
        %s576 = sld [smem:[#allocation2]]
        %v577 = vmax.f32 %v450, 0.0
        %v578 = vmax.f32 %v453, 0.0
        %v579 = vmax.f32 %v458, 0.0
        %v580 = vmax.f32 %v461, 0.0
        %v581 = vmax.f32 %v466, 0.0
        %v582 = vmax.f32 %v469, 0.0
        %v583 = vmax.f32 %v474, 0.0
        %v584 = vmax.f32 %v477, 0.0
        %v585 = vmax.f32 %v482, 0.0
        %v586 = vmax.f32 %v485, 0.0
        %v587 = vmax.f32 %v490, 0.0
        %v588 = vmax.f32 %v493, 0.0
        %v589 = vmax.f32 %v498, 0.0
        %v590 = vmax.f32 %v501, 0.0
        %v591 = vmax.f32 %v506, 0.0
        %v592 = vmax.f32 %v509, 0.0
        %v593 = vmax.f32 %v514, 0.0
        %v594 = vmax.f32 %v517, 0.0
        %v595 = vmax.f32 %v522, 0.0
        %v596 = vmax.f32 %v525, 0.0
        %v597 = vmax.f32 %v530, 0.0
        %v598 = vmax.f32 %v533, 0.0
        %v599 = vmax.f32 %v538, 0.0
        %v600 = vmax.f32 %v541, 0.0
        %v601 = vmax.f32 %v546, 0.0
        %v602 = vmax.f32 %v549, 0.0
        %v603 = vmax.f32 %v554, 0.0
        %v604 = vmax.f32 %v557, 0.0
        %v605 = vmax.f32 %v562, 0.0
        %v606 = vmax.f32 %v565, 0.0
        %v607 = vmax.f32 %v570, 0.0
        %v608 = vmax.f32 %v573, 0.0
        %v609 = vstv %s576
        %v610 = vmin.f32 %v609, %v577
        %v611 = vmin.f32 %v609, %v578
        %v612 = vmin.f32 %v609, %v579
        %v613 = vmin.f32 %v609, %v580
        %v614 = vmin.f32 %v609, %v581
        %v615 = vmin.f32 %v609, %v582
        %v616 = vmin.f32 %v609, %v583
        %v617 = vmin.f32 %v609, %v584
        %v618 = vmin.f32 %v609, %v585
        %v619 = vmin.f32 %v609, %v586
        %v620 = vmin.f32 %v609, %v587
        %v621 = vmin.f32 %v609, %v588
        %v622 = vmin.f32 %v609, %v589
        %v623 = vmin.f32 %v609, %v590
        %v624 = vmin.f32 %v609, %v591
        %v625 = vmin.f32 %v609, %v592
        %v626 = vmin.f32 %v609, %v593
        %v627 = vmin.f32 %v609, %v594
        %v628 = vmin.f32 %v609, %v595
        %v629 = vmin.f32 %v609, %v596
        %v630 = vmin.f32 %v609, %v597
        %v631 = vmin.f32 %v609, %v598
        %v632 = vmin.f32 %v609, %v599
        %v633 = vmin.f32 %v609, %v600
        %v634 = vmin.f32 %v609, %v601
        %v635 = vmin.f32 %v609, %v602
        %v636 = vmin.f32 %v609, %v603
        %v637 = vmin.f32 %v609, %v604
        %v638 = vmin.f32 %v609, %v605
        %v639 = vmin.f32 %v609, %v606
        %v640 = vmin.f32 %v609, %v607
        %v641 = vmin.f32 %v609, %v608
        %s642 = sld [smem:[#allocation2 + $0x1]]
        %v643 = vstv %s642
        %v644 = vmul.f32 %v610, %v643
        %v645 = vmul.f32 %v611, %v643
        %v646 = vmul.f32 %v612, %v643
        %v647 = vmul.f32 %v613, %v643
        %v648 = vmul.f32 %v614, %v643
        %v649 = vmul.f32 %v615, %v643
        %v650 = vmul.f32 %v616, %v643
        %v651 = vmul.f32 %v617, %v643
        %v652 = vmul.f32 %v618, %v643
        %v653 = vmul.f32 %v619, %v643
        %v654 = vmul.f32 %v620, %v643
        %v655 = vmul.f32 %v621, %v643
        %v656 = vmul.f32 %v622, %v643
        %v657 = vmul.f32 %v623, %v643
        %v658 = vmul.f32 %v624, %v643
        %v659 = vmul.f32 %v625, %v643
        %v660 = vmul.f32 %v626, %v643
        %v661 = vmul.f32 %v627, %v643
        %v662 = vmul.f32 %v628, %v643
        %v663 = vmul.f32 %v629, %v643
        %v664 = vmul.f32 %v630, %v643
        %v665 = vmul.f32 %v631, %v643
        %v666 = vmul.f32 %v632, %v643
        %v667 = vmul.f32 %v633, %v643
        %v668 = vmul.f32 %v634, %v643
        %v669 = vmul.f32 %v635, %v643
        %v670 = vmul.f32 %v636, %v643
        %v671 = vmul.f32 %v637, %v643
        %v672 = vmul.f32 %v638, %v643
        %v673 = vmul.f32 %v639, %v643
        %v674 = vmul.f32 %v640, %v643
        %v675 = vmul.f32 %v641, %v643
        %v676 = vround.ne.pseudo %v644
        %v677 = vround.ne.pseudo %v645
        %v678 = vround.ne.pseudo %v646
        %v679 = vround.ne.pseudo %v647
        %v680 = vround.ne.pseudo %v648
        %v681 = vround.ne.pseudo %v649
        %v682 = vround.ne.pseudo %v650
        %v683 = vround.ne.pseudo %v651
        %v684 = vround.ne.pseudo %v652
        %v685 = vround.ne.pseudo %v653
        %v686 = vround.ne.pseudo %v654
        %v687 = vround.ne.pseudo %v655
        %v688 = vround.ne.pseudo %v656
        %v689 = vround.ne.pseudo %v657
        %v690 = vround.ne.pseudo %v658
        %v691 = vround.ne.pseudo %v659
        %v692 = vround.ne.pseudo %v660
        %v693 = vround.ne.pseudo %v661
        %v694 = vround.ne.pseudo %v662
        %v695 = vround.ne.pseudo %v663
        %v696 = vround.ne.pseudo %v664
        %v697 = vround.ne.pseudo %v665
        %v698 = vround.ne.pseudo %v666
        %v699 = vround.ne.pseudo %v667
        %v700 = vround.ne.pseudo %v668
        %v701 = vround.ne.pseudo %v669
        %v702 = vround.ne.pseudo %v670
        %v703 = vround.ne.pseudo %v671
        %v704 = vround.ne.pseudo %v672
        %v705 = vround.ne.pseudo %v673
        %v706 = vround.ne.pseudo %v674
        %v707 = vround.ne.pseudo %v675
        %s708 = sld [smem:[#allocation2 + $0x2]]
        %v709 = vstv %s708
        %v710 = vmul.f32 %v676, %v709
        %v711 = vmul.f32 %v677, %v709
        %v712 = vmul.f32 %v678, %v709
        %v713 = vmul.f32 %v679, %v709
        %v714 = vmul.f32 %v680, %v709
        %v715 = vmul.f32 %v681, %v709
        %v716 = vmul.f32 %v682, %v709
        %v717 = vmul.f32 %v683, %v709
        %v718 = vmul.f32 %v684, %v709
        %v719 = vmul.f32 %v685, %v709
        %v720 = vmul.f32 %v686, %v709
        %v721 = vmul.f32 %v687, %v709
        %v722 = vmul.f32 %v688, %v709
        %v723 = vmul.f32 %v689, %v709
        %v724 = vmul.f32 %v690, %v709
        %v725 = vmul.f32 %v691, %v709
        %v726 = vmul.f32 %v692, %v709
        %v727 = vmul.f32 %v693, %v709
        %v728 = vmul.f32 %v694, %v709
        %v729 = vmul.f32 %v695, %v709
        %v730 = vmul.f32 %v696, %v709
        %v731 = vmul.f32 %v697, %v709
        %v732 = vmul.f32 %v698, %v709
        %v733 = vmul.f32 %v699, %v709
        %v734 = vmul.f32 %v700, %v709
        %v735 = vmul.f32 %v701, %v709
        %v736 = vmul.f32 %v702, %v709
        %v737 = vmul.f32 %v703, %v709
        %v738 = vmul.f32 %v704, %v709
        %v739 = vmul.f32 %v705, %v709
        %v740 = vmul.f32 %v706, %v709
        %v741 = vmul.f32 %v707, %v709
        %742 = vst [vmem:[%s213] sm:$0xff] %v710
        %743 = vst [vmem:[%s213 + $0x8] sm:$0xff] %v711
        %744 = vst [vmem:[%s213 + $0x10] sm:$0xff] %v712
        %745 = vst [vmem:[%s213 + $0x18] sm:$0xff] %v713
        %746 = vst [vmem:[%s213 + $0x20] sm:$0xff] %v714
        %747 = vst [vmem:[%s213 + $0x28] sm:$0xff] %v715
        %748 = vst [vmem:[%s213 + $0x30] sm:$0xff] %v716
        %749 = vst [vmem:[%s213 + $0x38] sm:$0xff] %v717
        %750 = vst [vmem:[%s213 + $0x40] sm:$0xff] %v718
        %751 = vst [vmem:[%s213 + $0x48] sm:$0xff] %v719
        %752 = vst [vmem:[%s213 + $0x50] sm:$0xff] %v720
        %753 = vst [vmem:[%s213 + $0x58] sm:$0xff] %v721
        %754 = vst [vmem:[%s213 + $0x60] sm:$0xff] %v722
        %755 = vst [vmem:[%s213 + $0x68] sm:$0xff] %v723
        %756 = vst [vmem:[%s213 + $0x70] sm:$0xff] %v724
        %757 = vst [vmem:[%s213 + $0x78] sm:$0xff] %v725
        %758 = vst [vmem:[%s213 + $0x80] sm:$0xff] %v726
        %759 = vst [vmem:[%s213 + $0x88] sm:$0xff] %v727
        %760 = vst [vmem:[%s213 + $0x90] sm:$0xff] %v728
        %761 = vst [vmem:[%s213 + $0x98] sm:$0xff] %v729
        %762 = vst [vmem:[%s213 + $0xa0] sm:$0xff] %v730
        %763 = vst [vmem:[%s213 + $0xa8] sm:$0xff] %v731
        %764 = vst [vmem:[%s213 + $0xb0] sm:$0xff] %v732
        %765 = vst [vmem:[%s213 + $0xb8] sm:$0xff] %v733
        %766 = vst [vmem:[%s213 + $0xc0] sm:$0xff] %v734
        %767 = vst [vmem:[%s213 + $0xc8] sm:$0xff] %v735
        %768 = vst [vmem:[%s213 + $0xd0] sm:$0xff] %v736
        %769 = vst [vmem:[%s213 + $0xd8] sm:$0xff] %v737
        %770 = vst [vmem:[%s213 + $0xe0] sm:$0xff] %v738
        %771 = vst [vmem:[%s213 + $0xe8] sm:$0xff] %v739
        %772 = vst [vmem:[%s213 + $0xf0] sm:$0xff] %v740
        %773 = vst [vmem:[%s213 + $0xf8] sm:$0xff] %v741
        %s774 = smul.u32 32, %s16
        %p775 = scmp.lt.s32.totalorder %s774, 63
        %s776 = scalar_select %p775, %s774, 63
        %s777 = smul.addr %s776, 8
        %s778 = scalar_lea.vmem %s4, %s777
        // Predicated region
        $region41: #{resnet_basicblock_forward.2} parent=35 // pred_check
          %p779 = pneg %p123
        $region42: #{resnet_basicblock_forward.2} parent=35 // pred_check_branch
          %781 = sbr.rel (%p779) target = $region44
        $region43: #{resnet_basicblock_forward.2} parent=35 // pred_region
          %s782 = smul.u32 32, %s16
        $region44: #{resnet_basicblock_forward.2} parent=35 // pred_fallthru
          _
      $region36: #{resnet_basicblock_forward.2} parent=5 // pred_fallthru
        _
      %p783 = scmp.le.s32.totalorder 2, %s11
      // Predicated region
      $region45: #{resnet_basicblock_forward.2} parent=5 // pred_check
        %p784 = pneg %p783
      $region46: #{resnet_basicblock_forward.2} parent=5 // pred_check_branch
        %786 = sbr.rel (%p784) target = $region48
      $region47: #{resnet_basicblock_forward.2} parent=5 // pred_region
        %s787 = ssub.s32 %s11, 2
        // Predicated region
        $region49: #{resnet_basicblock_forward.2} parent=47 // pred_check
          %p788 = pneg %p129
        $region50: #{resnet_basicblock_forward.2} parent=47 // pred_check_branch
          %790 = sbr.rel (%p788) target = $region52
        $region51: #{resnet_basicblock_forward.2} parent=47 // pred_region
          %s791 = smul.u32 32, %s17
          %p792 = scmp.lt.s32.totalorder %s791, 63
          %s793 = scalar_select %p792, %s791, 63
          %s794 = smul.addr %s793, 8
          %s795 = scalar_lea.vmem %s4, %s794
        $region52: #{resnet_basicblock_forward.2} parent=47 // pred_fallthru
          _
      $region48: #{resnet_basicblock_forward.2} parent=5 // pred_fallthru
        _
    $region6: #{resnet_basicblock_forward.2} parent=1 // loop_footer
      %s15 = sadd.s32 1, %s11
    $region7: #{resnet_basicblock_forward.2} parent=1 // loop_footer_branch
      %10 = sbr.rel target = $region3
    $region8: #{resnet_basicblock_forward.2} parent=1 // loop_exit
      _
    %796 = vsyncpa [#allocation3], 1
    %s797 = scalar_lea.sflag [#allocation3], 1
    %798 = vsyncpa %s797, 1

// kernel: resnet_basicblock_forward.3
$region0: #{resnet_basicblock_forward.3}
  #allocation0 [shape = 'u32[]', space=smem, size = 0x4, offset = 0x4, fixed_abs, tag = 'smem constant byte address 0x4 - core index']
  #allocation1 [shape = 'u32[144,128]{1,0:T(1,128)}', space=vmem, size = 0x12000, scoped, tag = 'internal scratch']
  %s0 = inlined_call_operand.vmem [shape: f32[3], index: 0, kind: input, shape index: {}]
  %s1 = inlined_call_operand.vmem [shape: bf16[512,128], index: 1, kind: input, shape index: {}]
  %s2 = inlined_call_operand.vmem [shape: bf16[128,128], index: 2, kind: input, shape index: {}]
  %s3 = inlined_call_operand.vmem [shape: f32[1,128], index: 3, kind: input, shape index: {}]
  %s4 = inlined_call_operand.vmem [shape: f32[512,128], index: 4, kind: input, shape index: {}]
  %s5 = inlined_call_operand.vmem [shape: f32[512,128], index: 5, kind: output, shape index: {}]
  %s6 = sld [smem:[#allocation0]]
  $region57: #{resnet_basicblock_forward.3} parent=0
    _
  %s8 = ssub.s32 1, %s6
  %s9 = scalar_select 0, %s8, %s6
  $region1: #{resnet_basicblock_forward.3} parent=0
    #allocation2 [shape = 'u8[512]{0}', space=smem, size = 0x200, scoped, tag = 'input window, operand 0, single buffered']
    #allocation3 [shape = 's32[2]{0}', space=sflag, size = 0x8, scoped, tag = 'scoped memory for resnet_basicblock_forward.3']
    %10 = vsyncpa [#allocation3], 0
    loop: start=0, step=1, limit=4
    $region2: #{resnet_basicblock_forward.3} parent=1 // loop_pre_header
      _
    $region3: #{resnet_basicblock_forward.3} parent=1 // loop_header
      %s12 = sphi 0, %s16
      %p13 = scmp.ge.s32.totalorder %s12, 4
      %s20 = sphi 0, %s20
      %s22 = sphi 0, %s20
      %s23 = sphi 0, %s22
      %s37 = sphi 0, %s23
      %s43 = sphi 0, %s45
      %s46 = sphi 0, %s43
      %s47 = sphi 0, %s46
      %s63 = sphi 0, %s47
      %s67 = sphi 0, %s67
      %s69 = sphi 0, %s67
      %s70 = sphi 0, %s69
      %s84 = sphi 0, %s70
      %s88 = sphi 0, %s88
      %s90 = sphi 0, %s88
      %s91 = sphi 0, %s90
      %s105 = sphi 0, %s91
      %s111 = sphi 0, %s113
      %s114 = sphi 0, %s111
      %s115 = sphi 0, %s114
      %s131 = sphi 0, %s115
      %s137 = sphi 0, %s139
      %s140 = sphi 0, %s137
      %s141 = sphi 0, %s140
      %s157 = sphi 0, %s141
    $region4: #{resnet_basicblock_forward.3} parent=1 // loop_header_branch
      %15 = sbr.rel (%p13) target = $region8
    $region5: #{resnet_basicblock_forward.3} parent=1 // loop_body
      %s17 = ssub.s32 %s12, 1
      %s18 = ssub.s32 %s12, 2
      %s19 = sadd.s32 %s12, 1
      %s21 = sadd.s32 %s20, 1
      %p24 = scmp.eq.s32.totalorder %s12, 1
      %p25 = scmp.ne.s32.totalorder %s20, %s22
      %p26 = scmp.eq.s32.totalorder %s12, 0
      %p27 = por %p25, %p26
      %p28 = scmp.ne.s32.totalorder %s20, %s22
      %p29 = scmp.eq.s32.totalorder %s17, 1
      %p30 = por %p28, %p29
      %p31 = scmp.ne.s32.totalorder %s22, %s23
      %p32 = scmp.eq.s32.totalorder %s17, 0
      %p33 = por %p31, %p32
      %p34 = scmp.ne.s32.totalorder %s22, %s23
      %p35 = scmp.eq.s32.totalorder %s18, 1
      %p36 = por %p34, %p35
      %p38 = scmp.ne.s32.totalorder %s23, %s37
      %p39 = scmp.eq.s32.totalorder %s18, 0
      %p40 = por %p38, %p39
      %s41 = ssub.s32 %s12, %s19
      %p42 = scmp.eq.s32.totalorder %s41, 0
      %s44 = sadd.s32 %s43, 1
      %s45 = scalar_select %p42, %s43, %s44
      %p48 = pneg %p42
      %p49 = scmp.eq.s32.totalorder %s12, 1
      %p50 = por %p48, %p49
      %p51 = scmp.ne.s32.totalorder %s43, %s46
      %p52 = scmp.eq.s32.totalorder %s12, 0
      %p53 = por %p51, %p52
      %p54 = scmp.ne.s32.totalorder %s43, %s46
      %p55 = scmp.eq.s32.totalorder %s17, 1
      %p56 = por %p54, %p55
      %p57 = scmp.ne.s32.totalorder %s46, %s47
      %p58 = scmp.eq.s32.totalorder %s17, 0
      %p59 = por %p57, %p58
      %p60 = scmp.ne.s32.totalorder %s46, %s47
      %p61 = scmp.eq.s32.totalorder %s18, 1
      %p62 = por %p60, %p61
      %p64 = scmp.ne.s32.totalorder %s47, %s63
      %p65 = scmp.eq.s32.totalorder %s18, 0
      %p66 = por %p64, %p65
      %s68 = sadd.s32 %s67, 1
      %p71 = scmp.eq.s32.totalorder %s12, 1
      %p72 = scmp.ne.s32.totalorder %s67, %s69
      %p73 = scmp.eq.s32.totalorder %s12, 0
      %p74 = por %p72, %p73
      %p75 = scmp.ne.s32.totalorder %s67, %s69
      %p76 = scmp.eq.s32.totalorder %s17, 1
      %p77 = por %p75, %p76
      %p78 = scmp.ne.s32.totalorder %s69, %s70
      %p79 = scmp.eq.s32.totalorder %s17, 0
      %p80 = por %p78, %p79
      %p81 = scmp.ne.s32.totalorder %s69, %s70
      %p82 = scmp.eq.s32.totalorder %s18, 1
      %p83 = por %p81, %p82
      %p85 = scmp.ne.s32.totalorder %s70, %s84
      %p86 = scmp.eq.s32.totalorder %s18, 0
      %p87 = por %p85, %p86
      %s89 = sadd.s32 %s88, 1
      %p92 = scmp.eq.s32.totalorder %s12, 1
      %p93 = scmp.ne.s32.totalorder %s88, %s90
      %p94 = scmp.eq.s32.totalorder %s12, 0
      %p95 = por %p93, %p94
      %p96 = scmp.ne.s32.totalorder %s88, %s90
      %p97 = scmp.eq.s32.totalorder %s17, 1
      %p98 = por %p96, %p97
      %p99 = scmp.ne.s32.totalorder %s90, %s91
      %p100 = scmp.eq.s32.totalorder %s17, 0
      %p101 = por %p99, %p100
      %p102 = scmp.ne.s32.totalorder %s90, %s91
      %p103 = scmp.eq.s32.totalorder %s18, 1
      %p104 = por %p102, %p103
      %p106 = scmp.ne.s32.totalorder %s91, %s105
      %p107 = scmp.eq.s32.totalorder %s18, 0
      %p108 = por %p106, %p107
      %s109 = ssub.s32 %s12, %s19
      %p110 = scmp.eq.s32.totalorder %s109, 0
      %s112 = sadd.s32 %s111, 1
      %s113 = scalar_select %p110, %s111, %s112
      %p116 = pneg %p110
      %p117 = scmp.eq.s32.totalorder %s12, 1
      %p118 = por %p116, %p117
      %p119 = scmp.ne.s32.totalorder %s111, %s114
      %p120 = scmp.eq.s32.totalorder %s12, 0
      %p121 = por %p119, %p120
      %p122 = scmp.ne.s32.totalorder %s111, %s114
      %p123 = scmp.eq.s32.totalorder %s17, 1
      %p124 = por %p122, %p123
      %p125 = scmp.ne.s32.totalorder %s114, %s115
      %p126 = scmp.eq.s32.totalorder %s17, 0
      %p127 = por %p125, %p126
      %p128 = scmp.ne.s32.totalorder %s114, %s115
      %p129 = scmp.eq.s32.totalorder %s18, 1
      %p130 = por %p128, %p129
      %p132 = scmp.ne.s32.totalorder %s115, %s131
      %p133 = scmp.eq.s32.totalorder %s18, 0
      %p134 = por %p132, %p133
      %s135 = ssub.s32 %s12, %s19
      %p136 = scmp.eq.s32.totalorder %s135, 0
      %s138 = sadd.s32 %s137, 1
      %s139 = scalar_select %p136, %s137, %s138
      %p142 = pneg %p136
      %p143 = scmp.eq.s32.totalorder %s12, 1
      %p144 = por %p142, %p143
      %p145 = scmp.ne.s32.totalorder %s137, %s140
      %p146 = scmp.eq.s32.totalorder %s12, 0
      %p147 = por %p145, %p146
      %p148 = scmp.ne.s32.totalorder %s137, %s140
      %p149 = scmp.eq.s32.totalorder %s17, 1
      %p150 = por %p148, %p149
      %p151 = scmp.ne.s32.totalorder %s140, %s141
      %p152 = scmp.eq.s32.totalorder %s17, 0
      %p153 = por %p151, %p152
      %p154 = scmp.ne.s32.totalorder %s140, %s141
      %p155 = scmp.eq.s32.totalorder %s18, 1
      %p156 = por %p154, %p155
      %p158 = scmp.ne.s32.totalorder %s141, %s157
      %p159 = scmp.eq.s32.totalorder %s18, 0
      %p160 = por %p158, %p159
      %p161 = scmp.le.s32.totalorder 1, %s12
      %p162 = scmp.lt.s32.totalorder %s12, 3
      %p163 = pnand %p161, %p162
      %p164 = pneg %p163
      // Predicated region
      $region9: #{resnet_basicblock_forward.3} parent=5 // pred_check
        _
      $region10: #{resnet_basicblock_forward.3} parent=5 // pred_check_branch
        %166 = sbr.rel (%p163) target = $region12
      $region11: #{resnet_basicblock_forward.3} parent=5 // pred_region
        %s167 = ssub.s32 %s12, 1
        // Predicated region
        $region13: #{resnet_basicblock_forward.3} parent=11 // pred_check
          %p168 = pneg %p33
        $region14: #{resnet_basicblock_forward.3} parent=11 // pred_check_branch
          %170 = sbr.rel (%p168) target = $region16
        $region15: #{resnet_basicblock_forward.3} parent=11 // pred_region
          %s172 = ssub.s32 16, 16
          %173 = vsyncadd [#allocation3], %s172
          %s175 = sshll.u32 %s0, 4
          %s176 = int_to_ptr.vmem [resolvable:$true] %s175
          %178 = dma.vmem_to_smem %s176, 16, [#allocation2], [#allocation3]
        $region16: #{resnet_basicblock_forward.3} parent=11 // pred_fallthru
          _
        // Predicated region
        $region17: #{resnet_basicblock_forward.3} parent=11 // pred_check
          %p179 = pneg %p80
        $region18: #{resnet_basicblock_forward.3} parent=11 // pred_check_branch
          %181 = sbr.rel (%p179) target = $region20
        $region19: #{resnet_basicblock_forward.3} parent=11 // pred_region
          _
        $region20: #{resnet_basicblock_forward.3} parent=11 // pred_fallthru
          _
        // Predicated region
        $region21: #{resnet_basicblock_forward.3} parent=11 // pred_check
          %p182 = pneg %p101
        $region22: #{resnet_basicblock_forward.3} parent=11 // pred_check_branch
          %184 = sbr.rel (%p182) target = $region24
        $region23: #{resnet_basicblock_forward.3} parent=11 // pred_region
          _
        $region24: #{resnet_basicblock_forward.3} parent=11 // pred_fallthru
          _
      $region12: #{resnet_basicblock_forward.3} parent=5 // pred_fallthru
        _
      %p185 = scmp.lt.s32.totalorder %s12, 2
      // Predicated region
      $region25: #{resnet_basicblock_forward.3} parent=5 // pred_check
        %p186 = pneg %p185
      $region26: #{resnet_basicblock_forward.3} parent=5 // pred_check_branch
        %188 = sbr.rel (%p186) target = $region28
      $region27: #{resnet_basicblock_forward.3} parent=5 // pred_region
        // Predicated region
        $region29: #{resnet_basicblock_forward.3} parent=27 // pred_check
          %p189 = pneg %p53
        $region30: #{resnet_basicblock_forward.3} parent=27 // pred_check_branch
          %191 = sbr.rel (%p189) target = $region32
        $region31: #{resnet_basicblock_forward.3} parent=27 // pred_region
          %s192 = smul.u32 32, %s12
          %p193 = scmp.lt.s32.totalorder %s192, 63
          %s194 = scalar_select %p193, %s192, 63
          %s195 = smul.addr %s194, 4
          %s196 = scalar_lea.vmem %s1, %s195
          %s197 = smul.u32 32, %s12
        $region32: #{resnet_basicblock_forward.3} parent=27 // pred_fallthru
          _
        // Predicated region
        $region33: #{resnet_basicblock_forward.3} parent=27 // pred_check
          %p198 = pneg %p121
        $region34: #{resnet_basicblock_forward.3} parent=27 // pred_check_branch
          %200 = sbr.rel (%p198) target = $region36
        $region35: #{resnet_basicblock_forward.3} parent=27 // pred_region
          %s201 = smul.u32 32, %s12
          %p202 = scmp.lt.s32.totalorder %s201, 63
          %s203 = scalar_select %p202, %s201, 63
          %s204 = smul.addr %s203, 8
          %s205 = scalar_lea.vmem %s4, %s204
          %s206 = smul.u32 32, %s12
        $region36: #{resnet_basicblock_forward.3} parent=27 // pred_fallthru
          _
      $region28: #{resnet_basicblock_forward.3} parent=5 // pred_fallthru
        _
      %p207 = scmp.le.s32.totalorder 1, %s12
      %p208 = scmp.lt.s32.totalorder %s12, 3
      %p209 = pnand %p207, %p208
      %p210 = pneg %p209
      // Predicated region
      $region37: #{resnet_basicblock_forward.3} parent=5 // pred_check
        _
      $region38: #{resnet_basicblock_forward.3} parent=5 // pred_check_branch
        %212 = sbr.rel (%p209) target = $region40
      $region39: #{resnet_basicblock_forward.3} parent=5 // pred_region
        %s213 = ssub.s32 %s12, 1
        // Predicated region
        $region41: #{resnet_basicblock_forward.3} parent=39 // pred_check
          %p214 = pneg %p33
        $region42: #{resnet_basicblock_forward.3} parent=39 // pred_check_branch
          %216 = sbr.rel (%p214) target = $region44
        $region43: #{resnet_basicblock_forward.3} parent=39 // pred_region
          %217 = dma.done [#allocation3], 16
        $region44: #{resnet_basicblock_forward.3} parent=39 // pred_fallthru
          _
        %218 = sfence
        %p219 = pneg %p33
        %p220 = pneg %p30
        %s221 = smul.u32 32, %s17
        %p222 = scmp.lt.s32.totalorder %s221, 63
        %s223 = scalar_select %p222, %s221, 63
        %s224 = smul.addr %s223, 4
        %s225 = scalar_lea.vmem %s1, %s224
        %p226 = pneg %p59
        %p227 = pneg %p56
        %p228 = pneg %p80
        %p229 = pneg %p77
        %p230 = pneg %p101
        %p231 = pneg %p98
        %s232 = smul.u32 32, %s17
        %p233 = scmp.lt.s32.totalorder %s232, 63
        %s234 = scalar_select %p233, %s232, 63
        %s235 = smul.addr %s234, 8
        %s236 = scalar_lea.vmem %s4, %s235
        %p237 = pneg %p127
        %p238 = pneg %p124
        %p239 = pneg %p153
        %p240 = pneg %p150
        %s241 = smul.u32 32, %s17
        %p242 = scmp.lt.s32.totalorder %s241, 63
        %s243 = scalar_select %p242, %s241, 63
        %s244 = smul.addr %s243, 8
        %s245 = scalar_lea.vmem %s5, %s244
        %s246 = smul.u32 32, %s17
        %p247 = scmp.lt.s32.totalorder %s246, 63
        %s248 = scalar_select %p247, %s246, 63
        %s249 = smul.addr %s248, 4
        %s250 = scalar_lea.vmem %s1, %s249
        %s251 = smul.u32 32, %s17
        %s252 = smul.u32 32, %s17
        %p253 = scmp.lt.s32.totalorder %s252, 63
        %s254 = scalar_select %p253, %s252, 63
        %s255 = smul.addr %s254, 8
        %s256 = scalar_lea.vmem %s4, %s255
        %s257 = smul.u32 32, %s17
        %s258 = smul.u32 32, %s17
        %p259 = scmp.lt.s32.totalorder %s258, 63
        %s260 = scalar_select %p259, %s258, 63
        %s261 = smul.addr %s260, 8
        %s262 = scalar_lea.vmem %s5, %s261
        %s263 = smul.u32 32, %s17
        %v265 = vld [vmem:[%s250] sm:$0xf]
        %v266 = vld [vmem:[%s250 + $0x4] sm:$0xf]
        %v267 = vld [vmem:[%s250 + $0x8] sm:$0xf]
        %v268 = vld [vmem:[%s250 + $0xc] sm:$0xf]
        %v269 = vld [vmem:[%s250 + $0x10] sm:$0xf]
        %v270 = vld [vmem:[%s250 + $0x14] sm:$0xf]
        %v271 = vld [vmem:[%s250 + $0x18] sm:$0xf]
        %v272 = vld [vmem:[%s250 + $0x1c] sm:$0xf]
        %v273 = vld [vmem:[%s250 + $0x20] sm:$0xf]
        %v274 = vld [vmem:[%s250 + $0x24] sm:$0xf]
        %v275 = vld [vmem:[%s250 + $0x28] sm:$0xf]
        %v276 = vld [vmem:[%s250 + $0x2c] sm:$0xf]
        %v277 = vld [vmem:[%s250 + $0x30] sm:$0xf]
        %v278 = vld [vmem:[%s250 + $0x34] sm:$0xf]
        %v279 = vld [vmem:[%s250 + $0x38] sm:$0xf]
        %v280 = vld [vmem:[%s250 + $0x3c] sm:$0xf]
        %v281 = vld [vmem:[%s250 + $0x40] sm:$0xf]
        %v282 = vld [vmem:[%s250 + $0x44] sm:$0xf]
        %v283 = vld [vmem:[%s250 + $0x48] sm:$0xf]
        %v284 = vld [vmem:[%s250 + $0x4c] sm:$0xf]
        %v285 = vld [vmem:[%s250 + $0x50] sm:$0xf]
        %v286 = vld [vmem:[%s250 + $0x54] sm:$0xf]
        %v287 = vld [vmem:[%s250 + $0x58] sm:$0xf]
        %v288 = vld [vmem:[%s250 + $0x5c] sm:$0xf]
        %v289 = vld [vmem:[%s250 + $0x60] sm:$0xf]
        %v290 = vld [vmem:[%s250 + $0x64] sm:$0xf]
        %v291 = vld [vmem:[%s250 + $0x68] sm:$0xf]
        %v292 = vld [vmem:[%s250 + $0x6c] sm:$0xf]
        %v293 = vld [vmem:[%s250 + $0x70] sm:$0xf]
        %v294 = vld [vmem:[%s250 + $0x74] sm:$0xf]
        %v295 = vld [vmem:[%s250 + $0x78] sm:$0xf]
        %v296 = vld [vmem:[%s250 + $0x7c] sm:$0xf]
        %v297 = vld [vmem:[%s2] sm:$0xf]
        %v298 = vld [vmem:[%s2 + $0x4] sm:$0xf]
        %v299 = vld [vmem:[%s2 + $0x8] sm:$0xf]
        %v300 = vld [vmem:[%s2 + $0xc] sm:$0xf]
        %v301 = vld [vmem:[%s2 + $0x10] sm:$0xf]
        %v302 = vld [vmem:[%s2 + $0x14] sm:$0xf]
        %v303 = vld [vmem:[%s2 + $0x18] sm:$0xf]
        %v304 = vld [vmem:[%s2 + $0x1c] sm:$0xf]
        %v305 = vld [vmem:[%s2 + $0x20] sm:$0xf]
        %v306 = vld [vmem:[%s2 + $0x24] sm:$0xf]
        %v307 = vld [vmem:[%s2 + $0x28] sm:$0xf]
        %v308 = vld [vmem:[%s2 + $0x2c] sm:$0xf]
        %v309 = vld [vmem:[%s2 + $0x30] sm:$0xf]
        %v310 = vld [vmem:[%s2 + $0x34] sm:$0xf]
        %v311 = vld [vmem:[%s2 + $0x38] sm:$0xf]
        %v312 = vld [vmem:[%s2 + $0x3c] sm:$0xf]
        %v313 = vld [vmem:[%s3] sm:$0x1]
        %v315 = vlaneseq
        %v316 = vshrl.u32 %v315, 7
        %v317 = vsub.s32 0, %v316
        %v318 = vrot.slane %v313, %v317
        %v352 = vunpack.c.l.b16 %v265
        %v353 = vunpack.c.l.b16 %v266
        %v354 = vunpack.c.l.b16 %v267
        %v355 = vunpack.c.l.b16 %v268
        %v356 = vunpack.c.l.b16 %v269
        %v357 = vunpack.c.l.b16 %v270
        %v358 = vunpack.c.l.b16 %v271
        %v359 = vunpack.c.l.b16 %v272
        %v360 = vunpack.c.l.b16 %v273
        %v361 = vunpack.c.l.b16 %v274
        %v362 = vunpack.c.l.b16 %v275
        %v363 = vunpack.c.l.b16 %v276
        %v364 = vunpack.c.l.b16 %v277
        %v365 = vunpack.c.l.b16 %v278
        %v366 = vunpack.c.l.b16 %v279
        %v367 = vunpack.c.l.b16 %v280
        %v368 = vunpack.c.l.b16 %v281
        %v369 = vunpack.c.l.b16 %v282
        %v370 = vunpack.c.l.b16 %v283
        %v371 = vunpack.c.l.b16 %v284
        %v372 = vunpack.c.l.b16 %v285
        %v373 = vunpack.c.l.b16 %v286
        %v374 = vunpack.c.l.b16 %v287
        %v375 = vunpack.c.l.b16 %v288
        %v376 = vunpack.c.l.b16 %v289
        %v377 = vunpack.c.l.b16 %v290
        %v378 = vunpack.c.l.b16 %v291
        %v379 = vunpack.c.l.b16 %v292
        %v380 = vunpack.c.l.b16 %v293
        %v381 = vunpack.c.l.b16 %v294
        %v382 = vunpack.c.l.b16 %v295
        %v383 = vunpack.c.l.b16 %v296
        %v384 = vpack.c.b16 %v353, %v352
        %v385 = vpack.c.b16 %v355, %v354
        %v386 = vpack.c.b16 %v357, %v356
        %v387 = vpack.c.b16 %v359, %v358
        %v388 = vpack.c.b16 %v361, %v360
        %v389 = vpack.c.b16 %v363, %v362
        %v390 = vpack.c.b16 %v365, %v364
        %v391 = vpack.c.b16 %v367, %v366
        %v392 = vpack.c.b16 %v369, %v368
        %v393 = vpack.c.b16 %v371, %v370
        %v394 = vpack.c.b16 %v373, %v372
        %v395 = vpack.c.b16 %v375, %v374
        %v396 = vpack.c.b16 %v377, %v376
        %v397 = vpack.c.b16 %v379, %v378
        %v398 = vpack.c.b16 %v381, %v380
        %v399 = vpack.c.b16 %v383, %v382
        %v432 = vunpack.c.l.b16 %v297
        %v433 = vunpack.c.l.b16 %v298
        %v434 = vunpack.c.l.b16 %v299
        %v435 = vunpack.c.l.b16 %v300
        %v436 = vunpack.c.l.b16 %v301
        %v437 = vunpack.c.l.b16 %v302
        %v438 = vunpack.c.l.b16 %v303
        %v439 = vunpack.c.l.b16 %v304
        %v440 = vunpack.c.l.b16 %v305
        %v441 = vunpack.c.l.b16 %v306
        %v442 = vunpack.c.l.b16 %v307
        %v443 = vunpack.c.l.b16 %v308
        %v444 = vunpack.c.l.b16 %v309
        %v445 = vunpack.c.l.b16 %v310
        %v446 = vunpack.c.l.b16 %v311
        %v447 = vunpack.c.l.b16 %v312
        %v448 = vpack.c.b16 %v433, %v432
        %v449 = vpack.c.b16 %v435, %v434
        %v450 = vpack.c.b16 %v437, %v436
        %v451 = vpack.c.b16 %v439, %v438
        %v452 = vpack.c.b16 %v441, %v440
        %v453 = vpack.c.b16 %v443, %v442
        %v454 = vpack.c.b16 %v445, %v444
        %v455 = vpack.c.b16 %v447, %v446
        %464 = vmatprep.subr.bf16.mxu0 0
        %465 = vmatpush1.bf16.msra.mxu0 %v455
        %466 = vmatprep.subr.bf16.mxu0 0
        %467 = vmatpush1.bf16.msra.mxu0 %v454
        %468 = vmatprep.subr.bf16.mxu0 0
        %469 = vmatpush1.bf16.msra.mxu0 %v453
        %470 = vmatprep.subr.bf16.mxu0 0
        %471 = vmatpush1.bf16.msra.mxu0 %v452
        %472 = vmatprep.subr.bf16.mxu0 0
        %473 = vmatpush1.bf16.msra.mxu0 %v451
        %474 = vmatprep.subr.bf16.mxu0 0
        %475 = vmatpush1.bf16.msra.mxu0 %v450
        %476 = vmatprep.subr.bf16.mxu0 0
        %477 = vmatpush1.bf16.msra.mxu0 %v449
        %478 = vmatprep.subr.bf16.mxu0 0
        %479 = vmatpush1.bf16.msra.mxu0 %v448
        %480 = vmatprep.subr.bf16.mxu0 0
        %481 = vmatpush2.bf16.msra.mxu0 0
        %482 = vmatprep.subr.bf16.mxu0 0
        %483 = vmatpush2.bf16.msra.mxu0 0
        %484 = vmatprep.subr.bf16.mxu0 0
        %485 = vmatpush2.bf16.msra.mxu0 0
        %486 = vmatprep.subr.bf16.mxu0 0
        %487 = vmatpush2.bf16.msra.mxu0 0
        %488 = vmatprep.subr.bf16.mxu0 0
        %489 = vmatpush2.bf16.msra.mxu0 0
        %490 = vmatprep.subr.bf16.mxu0 0
        %491 = vmatpush2.bf16.msra.mxu0 0
        %492 = vmatprep.subr.bf16.mxu0 0
        %493 = vmatpush2.bf16.msra.mxu0 0
        %494 = vmatprep.subr.bf16.mxu0 0
        %495 = vmatpush2.bf16.msra.mxu0 0
        %496 = vmatprep.mubr.bf16.mxu0 0
        %497 = vmatmul.mubr.bf16.gmra.mxu0 %v384
        %v498 = vpop.f32.mrf.mxu0
        %v499 = vadd.f32 %v318, %v498
        %v500 = vpop.f32.mrf.mxu0
        %v501 = vpop.f32.mrf.mxu0
        %v502 = vadd.f32 %v318, %v501
        %v503 = vpop.f32.mrf.mxu0
        %504 = vmatprep.mubr.bf16.mxu0 0
        %505 = vmatmul.mubr.bf16.gmra.mxu0 %v385
        %v506 = vpop.f32.mrf.mxu0
        %v507 = vadd.f32 %v318, %v506
        %v508 = vpop.f32.mrf.mxu0
        %v509 = vpop.f32.mrf.mxu0
        %v510 = vadd.f32 %v318, %v509
        %v511 = vpop.f32.mrf.mxu0
        %512 = vmatprep.mubr.bf16.mxu0 0
        %513 = vmatmul.mubr.bf16.gmra.mxu0 %v386
        %v514 = vpop.f32.mrf.mxu0
        %v515 = vadd.f32 %v318, %v514
        %v516 = vpop.f32.mrf.mxu0
        %v517 = vpop.f32.mrf.mxu0
        %v518 = vadd.f32 %v318, %v517
        %v519 = vpop.f32.mrf.mxu0
        %520 = vmatprep.mubr.bf16.mxu0 0
        %521 = vmatmul.mubr.bf16.gmra.mxu0 %v387
        %v522 = vpop.f32.mrf.mxu0
        %v523 = vadd.f32 %v318, %v522
        %v524 = vpop.f32.mrf.mxu0
        %v525 = vpop.f32.mrf.mxu0
        %v526 = vadd.f32 %v318, %v525
        %v527 = vpop.f32.mrf.mxu0
        %528 = vmatprep.mubr.bf16.mxu0 0
        %529 = vmatmul.mubr.bf16.gmra.mxu0 %v388
        %v530 = vpop.f32.mrf.mxu0
        %v531 = vadd.f32 %v318, %v530
        %v532 = vpop.f32.mrf.mxu0
        %v533 = vpop.f32.mrf.mxu0
        %v534 = vadd.f32 %v318, %v533
        %v535 = vpop.f32.mrf.mxu0
        %536 = vmatprep.mubr.bf16.mxu0 0
        %537 = vmatmul.mubr.bf16.gmra.mxu0 %v389
        %v538 = vpop.f32.mrf.mxu0
        %v539 = vadd.f32 %v318, %v538
        %v540 = vpop.f32.mrf.mxu0
        %v541 = vpop.f32.mrf.mxu0
        %v542 = vadd.f32 %v318, %v541
        %v543 = vpop.f32.mrf.mxu0
        %544 = vmatprep.mubr.bf16.mxu0 0
        %545 = vmatmul.mubr.bf16.gmra.mxu0 %v390
        %v546 = vpop.f32.mrf.mxu0
        %v547 = vadd.f32 %v318, %v546
        %v548 = vpop.f32.mrf.mxu0
        %v549 = vpop.f32.mrf.mxu0
        %v550 = vadd.f32 %v318, %v549
        %v551 = vpop.f32.mrf.mxu0
        %552 = vmatprep.mubr.bf16.mxu0 0
        %553 = vmatmul.mubr.bf16.gmra.mxu0 %v391
        %v554 = vpop.f32.mrf.mxu0
        %v555 = vadd.f32 %v318, %v554
        %v556 = vpop.f32.mrf.mxu0
        %v557 = vpop.f32.mrf.mxu0
        %v558 = vadd.f32 %v318, %v557
        %v559 = vpop.f32.mrf.mxu0
        %560 = vmatprep.mubr.bf16.mxu0 0
        %561 = vmatmul.mubr.bf16.gmra.mxu0 %v392
        %v562 = vpop.f32.mrf.mxu0
        %v563 = vadd.f32 %v318, %v562
        %v564 = vpop.f32.mrf.mxu0
        %v565 = vpop.f32.mrf.mxu0
        %v566 = vadd.f32 %v318, %v565
        %v567 = vpop.f32.mrf.mxu0
        %568 = vmatprep.mubr.bf16.mxu0 0
        %569 = vmatmul.mubr.bf16.gmra.mxu0 %v393
        %v570 = vpop.f32.mrf.mxu0
        %v571 = vadd.f32 %v318, %v570
        %v572 = vpop.f32.mrf.mxu0
        %v573 = vpop.f32.mrf.mxu0
        %v574 = vadd.f32 %v318, %v573
        %v575 = vpop.f32.mrf.mxu0
        %576 = vmatprep.mubr.bf16.mxu0 0
        %577 = vmatmul.mubr.bf16.gmra.mxu0 %v394
        %v578 = vpop.f32.mrf.mxu0
        %v579 = vadd.f32 %v318, %v578
        %v580 = vpop.f32.mrf.mxu0
        %v581 = vpop.f32.mrf.mxu0
        %v582 = vadd.f32 %v318, %v581
        %v583 = vpop.f32.mrf.mxu0
        %584 = vmatprep.mubr.bf16.mxu0 0
        %585 = vmatmul.mubr.bf16.gmra.mxu0 %v395
        %v586 = vpop.f32.mrf.mxu0
        %v587 = vadd.f32 %v318, %v586
        %v588 = vpop.f32.mrf.mxu0
        %v589 = vpop.f32.mrf.mxu0
        %v590 = vadd.f32 %v318, %v589
        %v591 = vpop.f32.mrf.mxu0
        %592 = vmatprep.mubr.bf16.mxu0 0
        %593 = vmatmul.mubr.bf16.gmra.mxu0 %v396
        %v594 = vpop.f32.mrf.mxu0
        %v595 = vadd.f32 %v318, %v594
        %v596 = vpop.f32.mrf.mxu0
        %v597 = vpop.f32.mrf.mxu0
        %v598 = vadd.f32 %v318, %v597
        %v599 = vpop.f32.mrf.mxu0
        %600 = vmatprep.mubr.bf16.mxu0 0
        %601 = vmatmul.mubr.bf16.gmra.mxu0 %v397
        %v602 = vpop.f32.mrf.mxu0
        %v603 = vadd.f32 %v318, %v602
        %v604 = vpop.f32.mrf.mxu0
        %v605 = vpop.f32.mrf.mxu0
        %v606 = vadd.f32 %v318, %v605
        %v607 = vpop.f32.mrf.mxu0
        %608 = vmatprep.mubr.bf16.mxu0 0
        %609 = vmatmul.mubr.bf16.gmra.mxu0 %v398
        %v610 = vpop.f32.mrf.mxu0
        %v611 = vadd.f32 %v318, %v610
        %v612 = vpop.f32.mrf.mxu0
        %v613 = vpop.f32.mrf.mxu0
        %v614 = vadd.f32 %v318, %v613
        %v615 = vpop.f32.mrf.mxu0
        %616 = vmatprep.mubr.bf16.mxu0 0
        %617 = vmatmul.mubr.bf16.gmra.mxu0 %v399
        %v618 = vpop.f32.mrf.mxu0
        %v619 = vadd.f32 %v318, %v618
        %v620 = vpop.f32.mrf.mxu0
        %v621 = vpop.f32.mrf.mxu0
        %v622 = vadd.f32 %v318, %v621
        %v623 = vpop.f32.mrf.mxu0
        %624 = vdwg.mxu0
        %v625 = vld [vmem:[%s256] sm:$0xff]
        %v626 = vld [vmem:[%s256 + $0x8] sm:$0xff]
        %v627 = vld [vmem:[%s256 + $0x10] sm:$0xff]
        %v628 = vld [vmem:[%s256 + $0x18] sm:$0xff]
        %v629 = vld [vmem:[%s256 + $0x20] sm:$0xff]
        %v630 = vld [vmem:[%s256 + $0x28] sm:$0xff]
        %v631 = vld [vmem:[%s256 + $0x30] sm:$0xff]
        %v632 = vld [vmem:[%s256 + $0x38] sm:$0xff]
        %v633 = vld [vmem:[%s256 + $0x40] sm:$0xff]
        %v634 = vld [vmem:[%s256 + $0x48] sm:$0xff]
        %v635 = vld [vmem:[%s256 + $0x50] sm:$0xff]
        %v636 = vld [vmem:[%s256 + $0x58] sm:$0xff]
        %v637 = vld [vmem:[%s256 + $0x60] sm:$0xff]
        %v638 = vld [vmem:[%s256 + $0x68] sm:$0xff]
        %v639 = vld [vmem:[%s256 + $0x70] sm:$0xff]
        %v640 = vld [vmem:[%s256 + $0x78] sm:$0xff]
        %v641 = vld [vmem:[%s256 + $0x80] sm:$0xff]
        %v642 = vld [vmem:[%s256 + $0x88] sm:$0xff]
        %v643 = vld [vmem:[%s256 + $0x90] sm:$0xff]
        %v644 = vld [vmem:[%s256 + $0x98] sm:$0xff]
        %v645 = vld [vmem:[%s256 + $0xa0] sm:$0xff]
        %v646 = vld [vmem:[%s256 + $0xa8] sm:$0xff]
        %v647 = vld [vmem:[%s256 + $0xb0] sm:$0xff]
        %v648 = vld [vmem:[%s256 + $0xb8] sm:$0xff]
        %v649 = vld [vmem:[%s256 + $0xc0] sm:$0xff]
        %v650 = vld [vmem:[%s256 + $0xc8] sm:$0xff]
        %v651 = vld [vmem:[%s256 + $0xd0] sm:$0xff]
        %v652 = vld [vmem:[%s256 + $0xd8] sm:$0xff]
        %v653 = vld [vmem:[%s256 + $0xe0] sm:$0xff]
        %v654 = vld [vmem:[%s256 + $0xe8] sm:$0xff]
        %v655 = vld [vmem:[%s256 + $0xf0] sm:$0xff]
        %v656 = vld [vmem:[%s256 + $0xf8] sm:$0xff]
        %v657 = vadd.f32 %v499, %v625
        %v658 = vadd.f32 %v502, %v626
        %v659 = vadd.f32 %v507, %v627
        %v660 = vadd.f32 %v510, %v628
        %v661 = vadd.f32 %v515, %v629
        %v662 = vadd.f32 %v518, %v630
        %v663 = vadd.f32 %v523, %v631
        %v664 = vadd.f32 %v526, %v632
        %v665 = vadd.f32 %v531, %v633
        %v666 = vadd.f32 %v534, %v634
        %v667 = vadd.f32 %v539, %v635
        %v668 = vadd.f32 %v542, %v636
        %v669 = vadd.f32 %v547, %v637
        %v670 = vadd.f32 %v550, %v638
        %v671 = vadd.f32 %v555, %v639
        %v672 = vadd.f32 %v558, %v640
        %v673 = vadd.f32 %v563, %v641
        %v674 = vadd.f32 %v566, %v642
        %v675 = vadd.f32 %v571, %v643
        %v676 = vadd.f32 %v574, %v644
        %v677 = vadd.f32 %v579, %v645
        %v678 = vadd.f32 %v582, %v646
        %v679 = vadd.f32 %v587, %v647
        %v680 = vadd.f32 %v590, %v648
        %v681 = vadd.f32 %v595, %v649
        %v682 = vadd.f32 %v598, %v650
        %v683 = vadd.f32 %v603, %v651
        %v684 = vadd.f32 %v606, %v652
        %v685 = vadd.f32 %v611, %v653
        %v686 = vadd.f32 %v614, %v654
        %v687 = vadd.f32 %v619, %v655
        %v688 = vadd.f32 %v622, %v656
        %s689 = sld [smem:[#allocation2]]
        %v690 = vmax.f32 %v657, 0.0
        %v691 = vmax.f32 %v658, 0.0
        %v692 = vmax.f32 %v659, 0.0
        %v693 = vmax.f32 %v660, 0.0
        %v694 = vmax.f32 %v661, 0.0
        %v695 = vmax.f32 %v662, 0.0
        %v696 = vmax.f32 %v663, 0.0
        %v697 = vmax.f32 %v664, 0.0
        %v698 = vmax.f32 %v665, 0.0
        %v699 = vmax.f32 %v666, 0.0
        %v700 = vmax.f32 %v667, 0.0
        %v701 = vmax.f32 %v668, 0.0
        %v702 = vmax.f32 %v669, 0.0
        %v703 = vmax.f32 %v670, 0.0
        %v704 = vmax.f32 %v671, 0.0
        %v705 = vmax.f32 %v672, 0.0
        %v706 = vmax.f32 %v673, 0.0
        %v707 = vmax.f32 %v674, 0.0
        %v708 = vmax.f32 %v675, 0.0
        %v709 = vmax.f32 %v676, 0.0
        %v710 = vmax.f32 %v677, 0.0
        %v711 = vmax.f32 %v678, 0.0
        %v712 = vmax.f32 %v679, 0.0
        %v713 = vmax.f32 %v680, 0.0
        %v714 = vmax.f32 %v681, 0.0
        %v715 = vmax.f32 %v682, 0.0
        %v716 = vmax.f32 %v683, 0.0
        %v717 = vmax.f32 %v684, 0.0
        %v718 = vmax.f32 %v685, 0.0
        %v719 = vmax.f32 %v686, 0.0
        %v720 = vmax.f32 %v687, 0.0
        %v721 = vmax.f32 %v688, 0.0
        %v722 = vstv %s689
        %v723 = vmin.f32 %v722, %v690
        %v724 = vmin.f32 %v722, %v691
        %v725 = vmin.f32 %v722, %v692
        %v726 = vmin.f32 %v722, %v693
        %v727 = vmin.f32 %v722, %v694
        %v728 = vmin.f32 %v722, %v695
        %v729 = vmin.f32 %v722, %v696
        %v730 = vmin.f32 %v722, %v697
        %v731 = vmin.f32 %v722, %v698
        %v732 = vmin.f32 %v722, %v699
        %v733 = vmin.f32 %v722, %v700
        %v734 = vmin.f32 %v722, %v701
        %v735 = vmin.f32 %v722, %v702
        %v736 = vmin.f32 %v722, %v703
        %v737 = vmin.f32 %v722, %v704
        %v738 = vmin.f32 %v722, %v705
        %v739 = vmin.f32 %v722, %v706
        %v740 = vmin.f32 %v722, %v707
        %v741 = vmin.f32 %v722, %v708
        %v742 = vmin.f32 %v722, %v709
        %v743 = vmin.f32 %v722, %v710
        %v744 = vmin.f32 %v722, %v711
        %v745 = vmin.f32 %v722, %v712
        %v746 = vmin.f32 %v722, %v713
        %v747 = vmin.f32 %v722, %v714
        %v748 = vmin.f32 %v722, %v715
        %v749 = vmin.f32 %v722, %v716
        %v750 = vmin.f32 %v722, %v717
        %v751 = vmin.f32 %v722, %v718
        %v752 = vmin.f32 %v722, %v719
        %v753 = vmin.f32 %v722, %v720
        %v754 = vmin.f32 %v722, %v721
        %s755 = sld [smem:[#allocation2 + $0x1]]
        %v756 = vstv %s755
        %v757 = vmul.f32 %v723, %v756
        %v758 = vmul.f32 %v724, %v756
        %v759 = vmul.f32 %v725, %v756
        %v760 = vmul.f32 %v726, %v756
        %v761 = vmul.f32 %v727, %v756
        %v762 = vmul.f32 %v728, %v756
        %v763 = vmul.f32 %v729, %v756
        %v764 = vmul.f32 %v730, %v756
        %v765 = vmul.f32 %v731, %v756
        %v766 = vmul.f32 %v732, %v756
        %v767 = vmul.f32 %v733, %v756
        %v768 = vmul.f32 %v734, %v756
        %v769 = vmul.f32 %v735, %v756
        %v770 = vmul.f32 %v736, %v756
        %v771 = vmul.f32 %v737, %v756
        %v772 = vmul.f32 %v738, %v756
        %v773 = vmul.f32 %v739, %v756
        %v774 = vmul.f32 %v740, %v756
        %v775 = vmul.f32 %v741, %v756
        %v776 = vmul.f32 %v742, %v756
        %v777 = vmul.f32 %v743, %v756
        %v778 = vmul.f32 %v744, %v756
        %v779 = vmul.f32 %v745, %v756
        %v780 = vmul.f32 %v746, %v756
        %v781 = vmul.f32 %v747, %v756
        %v782 = vmul.f32 %v748, %v756
        %v783 = vmul.f32 %v749, %v756
        %v784 = vmul.f32 %v750, %v756
        %v785 = vmul.f32 %v751, %v756
        %v786 = vmul.f32 %v752, %v756
        %v787 = vmul.f32 %v753, %v756
        %v788 = vmul.f32 %v754, %v756
        %v789 = vround.ne.pseudo %v757
        %v790 = vround.ne.pseudo %v758
        %v791 = vround.ne.pseudo %v759
        %v792 = vround.ne.pseudo %v760
        %v793 = vround.ne.pseudo %v761
        %v794 = vround.ne.pseudo %v762
        %v795 = vround.ne.pseudo %v763
        %v796 = vround.ne.pseudo %v764
        %v797 = vround.ne.pseudo %v765
        %v798 = vround.ne.pseudo %v766
        %v799 = vround.ne.pseudo %v767
        %v800 = vround.ne.pseudo %v768
        %v801 = vround.ne.pseudo %v769
        %v802 = vround.ne.pseudo %v770
        %v803 = vround.ne.pseudo %v771
        %v804 = vround.ne.pseudo %v772
        %v805 = vround.ne.pseudo %v773
        %v806 = vround.ne.pseudo %v774
        %v807 = vround.ne.pseudo %v775
        %v808 = vround.ne.pseudo %v776
        %v809 = vround.ne.pseudo %v777
        %v810 = vround.ne.pseudo %v778
        %v811 = vround.ne.pseudo %v779
        %v812 = vround.ne.pseudo %v780
        %v813 = vround.ne.pseudo %v781
        %v814 = vround.ne.pseudo %v782
        %v815 = vround.ne.pseudo %v783
        %v816 = vround.ne.pseudo %v784
        %v817 = vround.ne.pseudo %v785
        %v818 = vround.ne.pseudo %v786
        %v819 = vround.ne.pseudo %v787
        %v820 = vround.ne.pseudo %v788
        %s821 = sld [smem:[#allocation2 + $0x2]]
        %v822 = vstv %s821
        %v823 = vmul.f32 %v789, %v822
        %v824 = vmul.f32 %v790, %v822
        %v825 = vmul.f32 %v791, %v822
        %v826 = vmul.f32 %v792, %v822
        %v827 = vmul.f32 %v793, %v822
        %v828 = vmul.f32 %v794, %v822
        %v829 = vmul.f32 %v795, %v822
        %v830 = vmul.f32 %v796, %v822
        %v831 = vmul.f32 %v797, %v822
        %v832 = vmul.f32 %v798, %v822
        %v833 = vmul.f32 %v799, %v822
        %v834 = vmul.f32 %v800, %v822
        %v835 = vmul.f32 %v801, %v822
        %v836 = vmul.f32 %v802, %v822
        %v837 = vmul.f32 %v803, %v822
        %v838 = vmul.f32 %v804, %v822
        %v839 = vmul.f32 %v805, %v822
        %v840 = vmul.f32 %v806, %v822
        %v841 = vmul.f32 %v807, %v822
        %v842 = vmul.f32 %v808, %v822
        %v843 = vmul.f32 %v809, %v822
        %v844 = vmul.f32 %v810, %v822
        %v845 = vmul.f32 %v811, %v822
        %v846 = vmul.f32 %v812, %v822
        %v847 = vmul.f32 %v813, %v822
        %v848 = vmul.f32 %v814, %v822
        %v849 = vmul.f32 %v815, %v822
        %v850 = vmul.f32 %v816, %v822
        %v851 = vmul.f32 %v817, %v822
        %v852 = vmul.f32 %v818, %v822
        %v853 = vmul.f32 %v819, %v822
        %v854 = vmul.f32 %v820, %v822
        %855 = vst [vmem:[%s262] sm:$0xff] %v823
        %856 = vst [vmem:[%s262 + $0x8] sm:$0xff] %v824
        %857 = vst [vmem:[%s262 + $0x10] sm:$0xff] %v825
        %858 = vst [vmem:[%s262 + $0x18] sm:$0xff] %v826
        %859 = vst [vmem:[%s262 + $0x20] sm:$0xff] %v827
        %860 = vst [vmem:[%s262 + $0x28] sm:$0xff] %v828
        %861 = vst [vmem:[%s262 + $0x30] sm:$0xff] %v829
        %862 = vst [vmem:[%s262 + $0x38] sm:$0xff] %v830
        %863 = vst [vmem:[%s262 + $0x40] sm:$0xff] %v831
        %864 = vst [vmem:[%s262 + $0x48] sm:$0xff] %v832
        %865 = vst [vmem:[%s262 + $0x50] sm:$0xff] %v833
        %866 = vst [vmem:[%s262 + $0x58] sm:$0xff] %v834
        %867 = vst [vmem:[%s262 + $0x60] sm:$0xff] %v835
        %868 = vst [vmem:[%s262 + $0x68] sm:$0xff] %v836
        %869 = vst [vmem:[%s262 + $0x70] sm:$0xff] %v837
        %870 = vst [vmem:[%s262 + $0x78] sm:$0xff] %v838
        %871 = vst [vmem:[%s262 + $0x80] sm:$0xff] %v839
        %872 = vst [vmem:[%s262 + $0x88] sm:$0xff] %v840
        %873 = vst [vmem:[%s262 + $0x90] sm:$0xff] %v841
        %874 = vst [vmem:[%s262 + $0x98] sm:$0xff] %v842
        %875 = vst [vmem:[%s262 + $0xa0] sm:$0xff] %v843
        %876 = vst [vmem:[%s262 + $0xa8] sm:$0xff] %v844
        %877 = vst [vmem:[%s262 + $0xb0] sm:$0xff] %v845
        %878 = vst [vmem:[%s262 + $0xb8] sm:$0xff] %v846
        %879 = vst [vmem:[%s262 + $0xc0] sm:$0xff] %v847
        %880 = vst [vmem:[%s262 + $0xc8] sm:$0xff] %v848
        %881 = vst [vmem:[%s262 + $0xd0] sm:$0xff] %v849
        %882 = vst [vmem:[%s262 + $0xd8] sm:$0xff] %v850
        %883 = vst [vmem:[%s262 + $0xe0] sm:$0xff] %v851
        %884 = vst [vmem:[%s262 + $0xe8] sm:$0xff] %v852
        %885 = vst [vmem:[%s262 + $0xf0] sm:$0xff] %v853
        %886 = vst [vmem:[%s262 + $0xf8] sm:$0xff] %v854
        %s887 = smul.u32 32, %s17
        %p888 = scmp.lt.s32.totalorder %s887, 63
        %s889 = scalar_select %p888, %s887, 63
        %s890 = smul.addr %s889, 8
        %s891 = scalar_lea.vmem %s5, %s890
        // Predicated region
        $region45: #{resnet_basicblock_forward.3} parent=39 // pred_check
          %p892 = pneg %p150
        $region46: #{resnet_basicblock_forward.3} parent=39 // pred_check_branch
          %894 = sbr.rel (%p892) target = $region48
        $region47: #{resnet_basicblock_forward.3} parent=39 // pred_region
          %s895 = smul.u32 32, %s17
        $region48: #{resnet_basicblock_forward.3} parent=39 // pred_fallthru
          _
      $region40: #{resnet_basicblock_forward.3} parent=5 // pred_fallthru
        _
      %p896 = scmp.le.s32.totalorder 2, %s12
      // Predicated region
      $region49: #{resnet_basicblock_forward.3} parent=5 // pred_check
        %p897 = pneg %p896
      $region50: #{resnet_basicblock_forward.3} parent=5 // pred_check_branch
        %899 = sbr.rel (%p897) target = $region52
      $region51: #{resnet_basicblock_forward.3} parent=5 // pred_region
        %s900 = ssub.s32 %s12, 2
        // Predicated region
        $region53: #{resnet_basicblock_forward.3} parent=51 // pred_check
          %p901 = pneg %p156
        $region54: #{resnet_basicblock_forward.3} parent=51 // pred_check_branch
          %903 = sbr.rel (%p901) target = $region56
        $region55: #{resnet_basicblock_forward.3} parent=51 // pred_region
          %s904 = smul.u32 32, %s18
          %p905 = scmp.lt.s32.totalorder %s904, 63
          %s906 = scalar_select %p905, %s904, 63
          %s907 = smul.addr %s906, 8
          %s908 = scalar_lea.vmem %s5, %s907
        $region56: #{resnet_basicblock_forward.3} parent=51 // pred_fallthru
          _
      $region52: #{resnet_basicblock_forward.3} parent=5 // pred_fallthru
        _
    $region6: #{resnet_basicblock_forward.3} parent=1 // loop_footer
      %s16 = sadd.s32 1, %s12
    $region7: #{resnet_basicblock_forward.3} parent=1 // loop_footer_branch
      %11 = sbr.rel target = $region3
    $region8: #{resnet_basicblock_forward.3} parent=1 // loop_exit
      _
    %909 = vsyncpa [#allocation3], 1
    %s910 = scalar_lea.sflag [#allocation3], 1
    %911 = vsyncpa %s910, 1

</llo_original>
